<compile_context>
chip_gen: v7x
topology: tpu7x:2x2x1
jax: 0.10.0
libtpu: 0.0.40
codegen_flags: <defaults>
</compile_context>

<pallas_src>
import functools

import jax
import jax.numpy as jnp
import numpy as np
from jax.experimental import pallas as pl
from jax.experimental.pallas import tpu as pltpu


# -----------------------------------------------------------------------------
# Feature probe: single-buffered invariant inputs (pipeline_mode=pl.Buffered(1))
# -----------------------------------------------------------------------------
def _probe_kernel(x_ref, o_ref):
    o_ref[...] = x_ref[...] + 1.0


@functools.lru_cache(maxsize=None)
def _single_buffer_supported():
    """True iff batch-invariant operands can be single-buffered (halves the VMEM
    held by the large Kronecker-support stack)."""
    try:
        call = pl.pallas_call(
            _probe_kernel,
            out_shape=jax.ShapeDtypeStruct((8, 128), jnp.float32),
            grid=(2,),
            in_specs=[pl.BlockSpec((8, 128), lambda i: (0, 0),
                                   pipeline_mode=pl.Buffered(1))],
            out_specs=pl.BlockSpec((8, 128), lambda i: (0, 0)),
        )
        jax.block_until_ready(call(jnp.zeros((8, 128), jnp.float32)))
        return True
    except Exception:
        return False


# -----------------------------------------------------------------------------
# Pallas kernel: one ODCRU cell step for a tile of Bt batch samples
# -----------------------------------------------------------------------------
def _odcru_cell_kernel(x_ref, h_ref, kk_ref, wgc_ref, wch_ref, bg_ref, bc_ref,
                       out_ref, f_ref, rh_ref, *, Bt, K2, Cin, Hd):
    """Ht = Ht_1 + u * (tanh(ODconv([Xt, r*Ht_1])) - Ht_1), u,r = sigmoid gates.

    x_ref  : (Bt*Cin, N2)    Xt transposed, rows (b, c), f32
    h_ref  : (Bt*Hd,  N2)    Ht_1 transposed, rows (b, h), f32
    kk_ref : (N2, K2*N2)     horizontally stacked kron(T0[o], T1[d]) supports
    wgc_ref: (3*Hd, K2*Cg)   packed [[WgX | WcX], [WgH | 0]]^T
    wch_ref: (Hd, K2*Hd)     candidate weights acting on the H features
    bg_ref : (2*Hd, 1)       gate bias
    bc_ref : (Hd, 1)         candidate bias
    out_ref: (Bt*Hd, N2)     new hidden state, rows (b, h), f32
    f_ref  : (K2*Cg, Bt*N2)  feature scratch: rows [Xt feats ; H feats], lanes (b,n)
    rh_ref : (Bt*Hd, N2)     reset*Ht_1 staging for the candidate spatial matmul
    """
    mmdt = kk_ref.dtype
    fdt = f_ref.dtype
    n2 = kk_ref.shape[0]
    nx = K2 * Cin
    kk = kk_ref[...]

    # Spatial ODconv features for all K^2 supports, whole batch tile: 2 matmuls.
    tx = jnp.dot(x_ref[...].astype(mmdt), kk,
                 preferred_element_type=jnp.float32)            # (Bt*Cin, K2*N2)
    th = jnp.dot(h_ref[...].astype(mmdt), kk,
                 preferred_element_type=jnp.float32)            # (Bt*Hd,  K2*N2)

    # Re-layout (b,c) rows x (r,n) lanes -> (r,c) rows x (b,n) lanes into F.
    for b in range(Bt):
        for r in range(K2):
            f_ref[r * Cin:(r + 1) * Cin, b * n2:(b + 1) * n2] = (
                tx[b * Cin:(b + 1) * Cin, r * n2:(r + 1) * n2].astype(fdt))
            f_ref[nx + r * Hd:nx + (r + 1) * Hd, b * n2:(b + 1) * n2] = (
                th[b * Hd:(b + 1) * Hd, r * n2:(r + 1) * n2].astype(fdt))

    # Gates + candidate-Xt contribution: ONE fused weight matmul over K2*Cg.
    gc = jnp.dot(wgc_ref[...], f_ref[...].astype(mmdt),
                 preferred_element_type=jnp.float32)            # (3Hd, Bt*N2)
    update = jax.nn.sigmoid(gc[:Hd, :] + bg_ref[:Hd, :])
    reset = jax.nn.sigmoid(gc[Hd:2 * Hd, :] + bg_ref[Hd:, :])
    cand_x = gc[2 * Hd:, :]

    # Candidate H-path: spatially transform reset*Ht_1, one fused weight matmul.
    for b in range(Bt):
        rh_ref[b * Hd:(b + 1) * Hd, :] = (
            reset[:, b * n2:(b + 1) * n2] * h_ref[b * Hd:(b + 1) * Hd, :]
        ).astype(fdt)
    trh = jnp.dot(rh_ref[...].astype(mmdt), kk,
                  preferred_element_type=jnp.float32)           # (Bt*Hd, K2*N2)
    for b in range(Bt):
        for r in range(K2):
            f_ref[nx + r * Hd:nx + (r + 1) * Hd, b * n2:(b + 1) * n2] = (
                trh[b * Hd:(b + 1) * Hd, r * n2:(r + 1) * n2].astype(fdt))
    cand = jnp.tanh(
        cand_x
        + jnp.dot(wch_ref[...], f_ref[nx:, :].astype(mmdt),
                  preferred_element_type=jnp.float32)
        + bc_ref[...])                                          # (Hd, Bt*N2)

    # Ht = (1-u)*Ht_1 + u*cand == Ht_1 + u*(cand - Ht_1); N2-wide lane slabs.
    for b in range(Bt):
        ht1_b = h_ref[b * Hd:(b + 1) * Hd, :]
        out_ref[b * Hd:(b + 1) * Hd, :] = ht1_b + update[:, b * n2:(b + 1) * n2] * (
            cand[:, b * n2:(b + 1) * n2] - ht1_b)


# -----------------------------------------------------------------------------
# VMEM budgeting, batch-tile selection, pallas_call construction
# -----------------------------------------------------------------------------
def _vmem_bytes(Bt, N2, Cin, Hd, K2, mm_bytes, f_bytes, const_bufs):
    Cg = Cin + Hd
    const = ((N2 * K2 * N2 + 3 * Hd * K2 * Cg + Hd * K2 * Hd) * mm_bytes
             + 3 * Hd * 4) * const_bufs
    blocks = 2 * 4 * (Bt * Cin * N2 + 2 * Bt * Hd * N2)         # x,h,out dbl-buffered
    scratch = (K2 * Cg * Bt * N2 + Bt * Hd * N2) * f_bytes
    temps = 4 * (Bt * Cg * K2 * N2 + Bt * Hd * K2 * N2 + 6 * Hd * Bt * N2)
    return const + blocks + scratch + temps


def _pick_bt(B, N2, Cin, Hd, K2, mm_bytes, f_bytes, single_buf):
    """Largest batch tile that fits a conservative (v7x-safe) VMEM budget while
    keeping >= 2 grid steps when possible (both v7x TCs busy, pipeline overlap)."""
    Cg = Cin + Hd
    const_bufs = 1 if single_buf else 2
    budget = 40 << 20
    max_bt = max(1, min(B, 8, 256 // max(Cg, 1)))
    cands = []
    for bt in range(1, max_bt + 1):
        if B % bt:
            continue
        row_ok = (((bt * Cin) % 8 == 0) or bt == B) and \
                 (((bt * Hd) % 8 == 0) or bt == B)
        if not row_ok:
            continue
        if _vmem_bytes(bt, N2, Cin, Hd, K2, mm_bytes, f_bytes, const_bufs) > budget:
            continue
        cands.append(bt)
    if not cands:
        return B        # full-batch block == full array dims, always legal
    pref = [bt for bt in cands if B // bt >= 2]
    return max(pref) if pref else max(cands)


@functools.lru_cache(maxsize=None)
def _build_cell_call(B, Bt, N2, Cin, Hd, K2, mm_name, f_name, single_buf):
    Cg = Cin + Hd
    mm_dtype = jnp.dtype(mm_name)
    f_dtype = jnp.dtype(f_name)

    def const_spec(shape):
        imap = lambda i: (0,) * len(shape)
        if single_buf:
            return pl.BlockSpec(shape, imap, pipeline_mode=pl.Buffered(1))
        return pl.BlockSpec(shape, imap)

    est = _vmem_bytes(Bt, N2, Cin, Hd, K2, mm_dtype.itemsize, f_dtype.itemsize,
                      1 if single_buf else 2)
    vmem_limit = int(min(max(est * 5 // 4 + (2 << 20), 16 << 20), 56 << 20))

    kernel = functools.partial(_odcru_cell_kernel, Bt=Bt, K2=K2, Cin=Cin, Hd=Hd)
    call = pl.pallas_call(
        kernel,
        out_shape=jax.ShapeDtypeStruct((B * Hd, N2), jnp.float32),
        grid=(B // Bt,),
        in_specs=[
            pl.BlockSpec((Bt * Cin, N2), lambda i: (i, 0)),      # Xt^T tile
            pl.BlockSpec((Bt * Hd, N2), lambda i: (i, 0)),       # Ht_1^T tile
            const_spec((N2, K2 * N2)),                           # kron supports
            const_spec((3 * Hd, K2 * Cg)),                       # packed Wg|WcX
            const_spec((Hd, K2 * Hd)),                           # WcH^T
            const_spec((2 * Hd, 1)),                             # gate bias
            const_spec((Hd, 1)),                                 # cand bias
        ],
        out_specs=pl.BlockSpec((Bt * Hd, N2), lambda i: (i, 0)),
        scratch_shapes=[pltpu.VMEM((K2 * Cg, Bt * N2), f_dtype),
                        pltpu.VMEM((Bt * Hd, N2), f_dtype)],
        compiler_params=pltpu.CompilerParams(
            dimension_semantics=("parallel",),
            vmem_limit_bytes=vmem_limit),
    )
    return jax.jit(call)


def odcru_cell_step(x_rows, h_rows, kkT, wgcT, wchT, bgT, bcT, *, B, Cin, Hd, K2):
    N2 = x_rows.shape[-1]
    mm_dtype = jnp.dtype(kkT.dtype)
    packed_ok = (mm_dtype == jnp.dtype(jnp.bfloat16)
                 and Cin % 16 == 0 and Hd % 16 == 0)
    f_dtype = mm_dtype if packed_ok else jnp.dtype(jnp.float32)
    single_buf = _single_buffer_supported()
    Bt = _pick_bt(B, N2, Cin, Hd, K2, mm_dtype.itemsize, f_dtype.itemsize,
                  single_buf)
    call = _build_cell_call(B, Bt, N2, Cin, Hd, K2, mm_dtype.name, f_dtype.name,
                            single_buf)
    return call(x_rows, h_rows, kkT, wgcT, wchT, bgT, bcT)


# -----------------------------------------------------------------------------
# Plain-JAX glue: Chebyshev expansion, kron supports, weight packing, params
# -----------------------------------------------------------------------------
def cheb_polynomials(A, K):
    N = A.shape[0]
    T = [jnp.eye(N, dtype=jnp.float32), A.astype(jnp.float32)]
    for _ in range(2, K):
        T.append(2.0 * A @ T[-1] - T[-2])
    return jnp.stack(T[:K], axis=0)


def build_support_stack(G, K):
    """(N*N, K*K*N*N): horizontally stacked kron(T0[o], T1[d]), r = o*K + d."""
    if isinstance(G, tuple):
        assert len(G) == 2
        T0 = cheb_polynomials(G[0], K)
        T1 = cheb_polynomials(G[1], K)
    else:
        assert G.shape[-3] == K
        T0, T1 = G, G
    blocks = [jnp.kron(T0[o], T1[d]) for o in range(K) for d in range(K)]
    return jnp.concatenate(blocks, axis=1)


def pack_weights(p, dtype):
    """Repack canonical PyTorch-layout weights for the fused kernel matmuls."""
    K2 = p["K"] ** 2
    Cin, Hd = p["input_dim"], p["hidden_dim"]
    Cg = Cin + Hd
    Wg3 = p["Wg"].reshape(K2, Cg, 2 * Hd)
    Wc3 = p["Wc"].reshape(K2, Cg, Hd)
    WgX = Wg3[:, :Cin, :].reshape(K2 * Cin, 2 * Hd)
    WgH = Wg3[:, Cin:, :].reshape(K2 * Hd, 2 * Hd)
    WcX = Wc3[:, :Cin, :].reshape(K2 * Cin, Hd)
    WcH = Wc3[:, Cin:, :].reshape(K2 * Hd, Hd)
    Wg_r = jnp.concatenate([WgX, WgH], axis=0)                    # (K2*Cg, 2Hd)
    WcX_p = jnp.concatenate([WcX, jnp.zeros((K2 * Hd, Hd), WcX.dtype)], axis=0)
    Wgc = jnp.concatenate([Wg_r, WcX_p], axis=1)                  # (K2*Cg, 3Hd)
    return Wgc.T.astype(dtype), WcH.T.astype(dtype)


def prepare_decoder_constants(params, G_list, matmul_dtype=jnp.bfloat16):
    """Per-layer kernel constants (kron stack, packed weights, biases), hoisted
    out of the forward pass so per-timestep decoder calls build them once."""
    consts = []
    for p, G in zip(params, G_list):
        # TODO(synk): callable graph-learner entries (G_list[l](x_t=...)) are not
        # supported; only (K,N,N) tensors or (A_origin, A_dest) tuples are handled.
        kkT = build_support_stack(G, p["K"]).astype(matmul_dtype)
        wgcT, wchT = pack_weights(p, matmul_dtype)
        consts.append((kkT, wgcT, wchT,
                       p["bg"].T.astype(jnp.float32),
                       p["bc"].T.astype(jnp.float32)))
    return consts


def xavier_normal(key, shape):
    std = float(np.sqrt(2.0 / (shape[0] + shape[1])))
    return std * jax.random.normal(key, shape, dtype=jnp.float32)


def init_params(keys, num_layers, output_dim, hidden_dim, K):
    params = []
    cur_in = output_dim
    for l in range(num_layers):
        Cg = cur_in + hidden_dim
        kWg, kWc, kbg, kbc = keys[4 * l: 4 * l + 4]
        params.append(dict(
            input_dim=cur_in, hidden_dim=hidden_dim, K=K,
            Wg=xavier_normal(kWg, (Cg * K * K, 2 * hidden_dim)),
            Wc=xavier_normal(kWc, (Cg * K * K, hidden_dim)),
            # Module inits biases to 0; randomize here only to exercise the
            # bias path in validation.
            bg=0.1 * jax.random.normal(kbg, (1, 2 * hidden_dim), jnp.float32),
            bc=0.1 * jax.random.normal(kbc, (1, hidden_dim), jnp.float32),
        ))
        cur_in = hidden_dim
    return params


def odcru_decoder_forward(params, G_list, Xt, H0_l, matmul_dtype=jnp.bfloat16,
                          layer_consts=None):
    """ODCRUdecoder.forward.  Xt: (B, N, N, Din), H0_l: list of (B, N, N, Hd).

    Returns (Ht_last, Ht_lst), each Ht of shape (B, N, N, Hd)."""
    assert Xt.ndim == 4
    assert len(params) == len(G_list) == len(H0_l)
    B, N, _, Din = Xt.shape
    N2 = N * N
    if layer_consts is None:
        layer_consts = prepare_decoder_constants(params, G_list, matmul_dtype)
    x_rows = jnp.transpose(Xt.reshape(B, N2, Din).astype(jnp.float32),
                           (0, 2, 1)).reshape(B * Din, N2)
    Ht_lst = []
    for l, p in enumerate(params):
        kkT, wgcT, wchT, bgT, bcT = layer_consts[l]
        Hd, Cin, K2 = p["hidden_dim"], p["input_dim"], p["K"] ** 2
        assert x_rows.shape[0] == B * Cin
        h_rows = jnp.transpose(H0_l[l].reshape(B, N2, Hd).astype(jnp.float32),
                               (0, 2, 1)).reshape(B * Hd, N2)
        ht_rows = odcru_cell_step(x_rows, h_rows, kkT, wgcT, wchT, bgT, bcT,
                                  B=B, Cin=Cin, Hd=Hd, K2=K2)
        Ht_lst.append(jnp.transpose(ht_rows.reshape(B, Hd, N2),
                                    (0, 2, 1)).reshape(B, N, N, Hd))
        x_rows = ht_rows
    return Ht_lst[-1], Ht_lst


# -----------------------------------------------------------------------------
# Pure-JAX reference (mirrors the PyTorch einsum formulation), for validation
# -----------------------------------------------------------------------------
def _odconv_ref(X, T0, T1, W, b, K):
    feats = []
    for o in range(K):
        for d in range(K):
            m1 = jnp.einsum('bncl,nm->bmcl', X, T0[o])
            m2 = jnp.einsum('bmcl,cd->bmdl', m1, T1[d])
            feats.append(m2)
    feat = jnp.concatenate(feats, axis=-1)
    return jnp.einsum('bmdk,kh->bmdh', feat, W) + b


def _cell_ref(T0, T1, Xt, Ht_1, p):
    Kc, Hd = p["K"], p["hidden_dim"]
    XH = jnp.concatenate([Xt, Ht_1], axis=-1)
    conv = _odconv_ref(XH, T0, T1, p["Wg"], p["bg"][0], Kc)
    u = jax.nn.sigmoid(conv[..., :Hd])
    r = jax.nn.sigmoid(conv[..., Hd:])
    cand_in = jnp.concatenate([Xt, r * Ht_1], axis=-1)
    c = jnp.tanh(_odconv_ref(cand_in, T0, T1, p["Wc"], p["bc"][0], Kc))
    return (1.0 - u) * Ht_1 + u * c


def _decoder_ref(params, G_list, Xt, H0_l):
    Xin = Xt
    Hts = []
    for l, p in enumerate(params):
        G = G_list[l]
        if isinstance(G, tuple):
            T0 = cheb_polynomials(G[0], p["K"])
            T1 = cheb_polynomials(G[1], p["K"])
        else:
            T0, T1 = G, G
        Ht = _cell_ref(T0, T1, Xin, H0_l[l], p)
        Hts.append(Ht)
        Xin = Ht
    return Hts[-1], Hts


# -----------------------------------------------------------------------------
def _run_case(B, N, K, output_dim, hidden_dim, num_layers, seed, check_bf16):
    key = jax.random.PRNGKey(seed)
    kx, kh, kg, kw = jax.random.split(key, 4)
    Xt = jax.random.normal(kx, (B, N, N, output_dim), dtype=jnp.float32)
    h_keys = jax.random.split(kh, num_layers)
    H0_l = [jax.random.normal(h_keys[l], (B, N, N, hidden_dim), jnp.float32)
            for l in range(num_layers)]
    g_keys = jax.random.split(kg, 2 * num_layers)
    G_list = [
        (0.3 * jax.random.normal(g_keys[2 * l], (N, N), dtype=jnp.float32),
         0.3 * jax.random.normal(g_keys[2 * l + 1], (N, N), dtype=jnp.float32))
        for l in range(num_layers)]
    w_keys = jax.random.split(kw, 4 * num_layers)
    params = init_params(w_keys, num_layers, output_dim, hidden_dim, K)

    ref_last, ref_lst = _decoder_ref(params, G_list, Xt, H0_l)

    # ---- f32 operands: strict check against the PyTorch-faithful reference
    consts_f32 = prepare_decoder_constants(params, G_list, jnp.float32)
    got_last, got_lst = odcru_decoder_forward(params, G_list, Xt, H0_l,
                                              layer_consts=consts_f32)
    got_last = jax.block_until_ready(got_last)
    for got, want in zip(got_lst, ref_lst):
        np.testing.assert_allclose(np.asarray(got), np.asarray(want),
                                   rtol=2e-4, atol=2e-4)
    np.testing.assert_allclose(np.asarray(got_last), np.asarray(ref_last),
                               rtol=2e-4, atol=2e-4)

    # ---- bf16 operands (f32 accumulation): fast path, statistical check
    if check_bf16:
        bf_last, bf_lst = odcru_decoder_forward(params, G_list, Xt, H0_l,
                                                matmul_dtype=jnp.bfloat16)
        bf_last = jax.block_until_ready(bf_last)
        for got, want in zip(bf_lst, ref_lst):
            g = np.asarray(got, np.float64)
            w = np.asarray(want, np.float64)
            assert np.isfinite(g).all(), "bf16 path produced non-finite values"
            rel = np.linalg.norm(g - w) / (np.linalg.norm(w) + 1e-12)
            assert rel < 0.15, f"bf16 path relative error too large: {rel}"


if __name__ == "__main__":
    # B=2 exercises the Bt=1 (grid>=2) path in both f32 and bf16;
    # B=4 exercises the batch-folded Bt=2 path with a strict f32 check.
    _run_case(B=2, N=8, K=3, output_dim=8, hidden_dim=16, num_layers=2,
              seed=0, check_bf16=True)
    _run_case(B=4, N=8, K=3, output_dim=8, hidden_dim=16, num_layers=2,
              seed=0, check_bf16=False)
    print("KERNEL_OK")
</pallas_src>

<mosaic_0001>
module attributes {stable_mosaic.version = 11 : i64} {
  func.func @_probe_kernel(%arg0: i32, %arg1: memref<8x128xf32, #tpu.memory_space<vmem>>, %arg2: memref<8x128xf32, #tpu.memory_space<vmem>>) attributes {dimension_semantics = [#tpu.dimension_semantics<arbitrary>], iteration_bounds = array<i64: 2>, scalar_prefetch = 0 : i64, scratch_operands = 0 : i64, tpu.core_type = #tpu.core_type<tc>, window_params = [{pipeline_mode = #tpu.pipeline_mode<synchronous>, transform_indices = @transform_0, window_bounds = array<i64: 8, 128>}, {pipeline_mode = #tpu.pipeline_mode<synchronous>, transform_indices = @transform_1, window_bounds = array<i64: 8, 128>}]} {
    %c0 = arith.constant 0 : index
    %c0_0 = arith.constant 0 : index
    %0 = vector.load %arg1[%c0, %c0_0] : memref<8x128xf32, #tpu.memory_space<vmem>>, vector<8x128xf32>
    %cst = arith.constant 1.000000e+00 : f32
    %1 = vector.broadcast %cst : f32 to vector<8x128xf32>
    %2 = arith.addf %0, %1 : vector<8x128xf32>
    %c0_1 = arith.constant 0 : index
    %c0_2 = arith.constant 0 : index
    %3 = vector.load %arg2[%c0_1, %c0_2] : memref<8x128xf32, #tpu.memory_space<vmem>>, vector<8x128xf32>
    tpu.vector_store %arg2[%c0_1, %c0_2], %2 {strides = array<i32>} : memref<8x128xf32, #tpu.memory_space<vmem>>, vector<8x128xf32>,
    return
  }
  func.func @transform_0(%arg0: i32) -> (i32, i32) {
    %c0_i32 = arith.constant 0 : i32
    %c0_i32_0 = arith.constant 0 : i32
    %c0_i32_1 = arith.constant 0 : i32
    return %c0_i32, %c0_i32_0 : i32, i32
  }
  func.func @transform_1(%arg0: i32) -> (i32, i32) {
    %c0_i32 = arith.constant 0 : i32
    %c0_i32_0 = arith.constant 0 : i32
    %c0_i32_1 = arith.constant 0 : i32
    return %c0_i32, %c0_i32_0 : i32, i32
  }
}

module attributes {stable_mosaic.version = 11 : i64} {
  func.func @_odcru_cell_kernel(%arg0: i32, %arg1: memref<8x64xf32, #tpu.memory_space<vmem>>, %arg2: memref<16x64xf32, #tpu.memory_space<vmem>>, %arg3: memref<64x576xf32, #tpu.memory_space<vmem>>, %arg4: memref<48x216xf32, #tpu.memory_space<vmem>>, %arg5: memref<16x144xf32, #tpu.memory_space<vmem>>, %arg6: memref<32x1xf32, #tpu.memory_space<vmem>>, %arg7: memref<16x1xf32, #tpu.memory_space<vmem>>, %arg8: memref<16x64xf32, #tpu.memory_space<vmem>>, %arg9: memref<216x64xf32, #tpu.memory_space<vmem>>, %arg10: memref<16x64xf32, #tpu.memory_space<vmem>>) attributes {dimension_semantics = [#tpu.dimension_semantics<parallel>], iteration_bounds = array<i64: 2>, scalar_prefetch = 0 : i64, scratch_operands = 2 : i64, tpu.core_type = #tpu.core_type<tc>, window_params = [{transform_indices = @transform_0, window_bounds = array<i64: 8, 64>}, {transform_indices = @transform_1, window_bounds = array<i64: 16, 64>}, {pipeline_mode = #tpu.pipeline_mode<synchronous>, transform_indices = @transform_2, window_bounds = array<i64: 64, 576>}, {pipeline_mode = #tpu.pipeline_mode<synchronous>, transform_indices = @transform_3, window_bounds = array<i64: 48, 216>}, {pipeline_mode = #tpu.pipeline_mode<synchronous>, transform_indices = @transform_4, window_bounds = array<i64: 16, 144>}, {pipeline_mode = #tpu.pipeline_mode<synchronous>, transform_indices = @transform_5, window_bounds = array<i64: 32, 1>}, {pipeline_mode = #tpu.pipeline_mode<synchronous>, transform_indices = @transform_6, window_bounds = array<i64: 16, 1>}, {transform_indices = @transform_7, window_bounds = array<i64: 16, 64>}]} {
    %c0 = arith.constant 0 : index
    %c0_0 = arith.constant 0 : index
    %0 = vector.load %arg3[%c0, %c0_0] : memref<64x576xf32, #tpu.memory_space<vmem>>, vector<64x576xf32>
    %c0_1 = arith.constant 0 : index
    %c0_2 = arith.constant 0 : index
    %1 = vector.load %arg1[%c0_1, %c0_2] : memref<8x64xf32, #tpu.memory_space<vmem>>, vector<8x64xf32>
    %cst = arith.constant dense<0.000000e+00> : vector<8x576xf32>
    %2 = tpu.matmul %1, %0, %cst {dimension_numbers = #tpu.dot_dimension_numbers<[1], [0], [0], [1], [0, 0, 1, 1], [], []>} : vector<8x64xf32>, vector<64x576xf32>, vector<8x576xf32> -> vector<8x576xf32>
    %c0_3 = arith.constant 0 : index
    %c0_4 = arith.constant 0 : index
    %3 = vector.load %arg2[%c0_3, %c0_4] : memref<16x64xf32, #tpu.memory_space<vmem>>, vector<16x64xf32>
    %cst_5 = arith.constant dense<0.000000e+00> : vector<16x576xf32>
    %4 = tpu.matmul %3, %0, %cst_5 {dimension_numbers = #tpu.dot_dimension_numbers<[1], [0], [0], [1], [0, 0, 1, 1], [], []>} : vector<16x64xf32>, vector<64x576xf32>, vector<16x576xf32> -> vector<16x576xf32>
    %5 = vector.extract_strided_slice %2 {offsets = [0, 0], sizes = [8, 64], strides = [1, 1]} : vector<8x576xf32> to vector<8x64xf32>
    %c0_6 = arith.constant 0 : index
    %c0_7 = arith.constant 0 : index
    %6 = vector.load %arg9[%c0_6, %c0_7] : memref<216x64xf32, #tpu.memory_space<vmem>>, vector<8x64xf32>
    tpu.vector_store %arg9[%c0_6, %c0_7], %5 {strides = array<i32>} : memref<216x64xf32, #tpu.memory_space<vmem>>, vector<8x64xf32>,
    %7 = vector.extract_strided_slice %4 {offsets = [0, 0], sizes = [16, 64], strides = [1, 1]} : vector<16x576xf32> to vector<16x64xf32>
    %c72 = arith.constant 72 : index
    %c0_8 = arith.constant 0 : index
    %8 = vector.load %arg9[%c72, %c0_8] : memref<216x64xf32, #tpu.memory_space<vmem>>, vector<16x64xf32>
    tpu.vector_store %arg9[%c72, %c0_8], %7 {strides = array<i32>} : memref<216x64xf32, #tpu.memory_space<vmem>>, vector<16x64xf32>,
    %9 = vector.extract_strided_slice %2 {offsets = [0, 64], sizes = [8, 64], strides = [1, 1]} : vector<8x576xf32> to vector<8x64xf32>
    %c8 = arith.constant 8 : index
    %c0_9 = arith.constant 0 : index
    %10 = vector.load %arg9[%c8, %c0_9] : memref<216x64xf32, #tpu.memory_space<vmem>>, vector<8x64xf32>
    tpu.vector_store %arg9[%c8, %c0_9], %9 {strides = array<i32>} : memref<216x64xf32, #tpu.memory_space<vmem>>, vector<8x64xf32>,
    %11 = vector.extract_strided_slice %4 {offsets = [0, 64], sizes = [16, 64], strides = [1, 1]} : vector<16x576xf32> to vector<16x64xf32>
    %c88 = arith.constant 88 : index
    %c0_10 = arith.constant 0 : index
    %12 = vector.load %arg9[%c88, %c0_10] : memref<216x64xf32, #tpu.memory_space<vmem>>, vector<16x64xf32>
    tpu.vector_store %arg9[%c88, %c0_10], %11 {strides = array<i32>} : memref<216x64xf32, #tpu.memory_space<vmem>>, vector<16x64xf32>,
    %13 = vector.extract_strided_slice %2 {offsets = [0, 128], sizes = [8, 64], strides = [1, 1]} : vector<8x576xf32> to vector<8x64xf32>
    %c16 = arith.constant 16 : index
    %c0_11 = arith.constant 0 : index
    %14 = vector.load %arg9[%c16, %c0_11] : memref<216x64xf32, #tpu.memory_space<vmem>>, vector<8x64xf32>
    tpu.vector_store %arg9[%c16, %c0_11], %13 {strides = array<i32>} : memref<216x64xf32, #tpu.memory_space<vmem>>, vector<8x64xf32>,
    %15 = vector.extract_strided_slice %4 {offsets = [0, 128], sizes = [16, 64], strides = [1, 1]} : vector<16x576xf32> to vector<16x64xf32>
    %c104 = arith.constant 104 : index
    %c0_12 = arith.constant 0 : index
    %16 = vector.load %arg9[%c104, %c0_12] : memref<216x64xf32, #tpu.memory_space<vmem>>, vector<16x64xf32>
    tpu.vector_store %arg9[%c104, %c0_12], %15 {strides = array<i32>} : memref<216x64xf32, #tpu.memory_space<vmem>>, vector<16x64xf32>,
    %17 = vector.extract_strided_slice %2 {offsets = [0, 192], sizes = [8, 64], strides = [1, 1]} : vector<8x576xf32> to vector<8x64xf32>
    %c24 = arith.constant 24 : index
    %c0_13 = arith.constant 0 : index
    %18 = vector.load %arg9[%c24, %c0_13] : memref<216x64xf32, #tpu.memory_space<vmem>>, vector<8x64xf32>
    tpu.vector_store %arg9[%c24, %c0_13], %17 {strides = array<i32>} : memref<216x64xf32, #tpu.memory_space<vmem>>, vector<8x64xf32>,
    %19 = vector.extract_strided_slice %4 {offsets = [0, 192], sizes = [16, 64], strides = [1, 1]} : vector<16x576xf32> to vector<16x64xf32>
    %c120 = arith.constant 120 : index
    %c0_14 = arith.constant 0 : index
    %20 = vector.load %arg9[%c120, %c0_14] : memref<216x64xf32, #tpu.memory_space<vmem>>, vector<16x64xf32>
    tpu.vector_store %arg9[%c120, %c0_14], %19 {strides = array<i32>} : memref<216x64xf32, #tpu.memory_space<vmem>>, vector<16x64xf32>,
    %21 = vector.extract_strided_slice %2 {offsets = [0, 256], sizes = [8, 64], strides = [1, 1]} : vector<8x576xf32> to vector<8x64xf32>
    %c32 = arith.constant 32 : index
    %c0_15 = arith.constant 0 : index
    %22 = vector.load %arg9[%c32, %c0_15] : memref<216x64xf32, #tpu.memory_space<vmem>>, vector<8x64xf32>
    tpu.vector_store %arg9[%c32, %c0_15], %21 {strides = array<i32>} : memref<216x64xf32, #tpu.memory_space<vmem>>, vector<8x64xf32>,
    %23 = vector.extract_strided_slice %4 {offsets = [0, 256], sizes = [16, 64], strides = [1, 1]} : vector<16x576xf32> to vector<16x64xf32>
    %c136 = arith.constant 136 : index
    %c0_16 = arith.constant 0 : index
    %24 = vector.load %arg9[%c136, %c0_16] : memref<216x64xf32, #tpu.memory_space<vmem>>, vector<16x64xf32>
    tpu.vector_store %arg9[%c136, %c0_16], %23 {strides = array<i32>} : memref<216x64xf32, #tpu.memory_space<vmem>>, vector<16x64xf32>,
    %25 = vector.extract_strided_slice %2 {offsets = [0, 320], sizes = [8, 64], strides = [1, 1]} : vector<8x576xf32> to vector<8x64xf32>
    %c40 = arith.constant 40 : index
    %c0_17 = arith.constant 0 : index
    %26 = vector.load %arg9[%c40, %c0_17] : memref<216x64xf32, #tpu.memory_space<vmem>>, vector<8x64xf32>
    tpu.vector_store %arg9[%c40, %c0_17], %25 {strides = array<i32>} : memref<216x64xf32, #tpu.memory_space<vmem>>, vector<8x64xf32>,
    %27 = vector.extract_strided_slice %4 {offsets = [0, 320], sizes = [16, 64], strides = [1, 1]} : vector<16x576xf32> to vector<16x64xf32>
    %c152 = arith.constant 152 : index
    %c0_18 = arith.constant 0 : index
    %28 = vector.load %arg9[%c152, %c0_18] : memref<216x64xf32, #tpu.memory_space<vmem>>, vector<16x64xf32>
    tpu.vector_store %arg9[%c152, %c0_18], %27 {strides = array<i32>} : memref<216x64xf32, #tpu.memory_space<vmem>>, vector<16x64xf32>,
    %29 = vector.extract_strided_slice %2 {offsets = [0, 384], sizes = [8, 64], strides = [1, 1]} : vector<8x576xf32> to vector<8x64xf32>
    %c48 = arith.constant 48 : index
    %c0_19 = arith.constant 0 : index
    %30 = vector.load %arg9[%c48, %c0_19] : memref<216x64xf32, #tpu.memory_space<vmem>>, vector<8x64xf32>
    tpu.vector_store %arg9[%c48, %c0_19], %29 {strides = array<i32>} : memref<216x64xf32, #tpu.memory_space<vmem>>, vector<8x64xf32>,
    %31 = vector.extract_strided_slice %4 {offsets = [0, 384], sizes = [16, 64], strides = [1, 1]} : vector<16x576xf32> to vector<16x64xf32>
    %c168 = arith.constant 168 : index
    %c0_20 = arith.constant 0 : index
    %32 = vector.load %arg9[%c168, %c0_20] : memref<216x64xf32, #tpu.memory_space<vmem>>, vector<16x64xf32>
    tpu.vector_store %arg9[%c168, %c0_20], %31 {strides = array<i32>} : memref<216x64xf32, #tpu.memory_space<vmem>>, vector<16x64xf32>,
    %33 = vector.extract_strided_slice %2 {offsets = [0, 448], sizes = [8, 64], strides = [1, 1]} : vector<8x576xf32> to vector<8x64xf32>
    %c56 = arith.constant 56 : index
    %c0_21 = arith.constant 0 : index
    %34 = vector.load %arg9[%c56, %c0_21] : memref<216x64xf32, #tpu.memory_space<vmem>>, vector<8x64xf32>
    tpu.vector_store %arg9[%c56, %c0_21], %33 {strides = array<i32>} : memref<216x64xf32, #tpu.memory_space<vmem>>, vector<8x64xf32>,
    %35 = vector.extract_strided_slice %4 {offsets = [0, 448], sizes = [16, 64], strides = [1, 1]} : vector<16x576xf32> to vector<16x64xf32>
    %c184 = arith.constant 184 : index
    %c0_22 = arith.constant 0 : index
    %36 = vector.load %arg9[%c184, %c0_22] : memref<216x64xf32, #tpu.memory_space<vmem>>, vector<16x64xf32>
    tpu.vector_store %arg9[%c184, %c0_22], %35 {strides = array<i32>} : memref<216x64xf32, #tpu.memory_space<vmem>>, vector<16x64xf32>,
    %37 = vector.extract_strided_slice %2 {offsets = [0, 512], sizes = [8, 64], strides = [1, 1]} : vector<8x576xf32> to vector<8x64xf32>
    %c64 = arith.constant 64 : index
    %c0_23 = arith.constant 0 : index
    %38 = vector.load %arg9[%c64, %c0_23] : memref<216x64xf32, #tpu.memory_space<vmem>>, vector<8x64xf32>
    tpu.vector_store %arg9[%c64, %c0_23], %37 {strides = array<i32>} : memref<216x64xf32, #tpu.memory_space<vmem>>, vector<8x64xf32>,
    %39 = vector.extract_strided_slice %4 {offsets = [0, 512], sizes = [16, 64], strides = [1, 1]} : vector<16x576xf32> to vector<16x64xf32>
    %c200 = arith.constant 200 : index
    %c0_24 = arith.constant 0 : index
    %40 = vector.load %arg9[%c200, %c0_24] : memref<216x64xf32, #tpu.memory_space<vmem>>, vector<16x64xf32>
    tpu.vector_store %arg9[%c200, %c0_24], %39 {strides = array<i32>} : memref<216x64xf32, #tpu.memory_space<vmem>>, vector<16x64xf32>,
    %c0_25 = arith.constant 0 : index
    %c0_26 = arith.constant 0 : index
    %41 = vector.load %arg4[%c0_25, %c0_26] : memref<48x216xf32, #tpu.memory_space<vmem>>, vector<48x216xf32>
    %c0_27 = arith.constant 0 : index
    %c0_28 = arith.constant 0 : index
    %42 = vector.load %arg9[%c0_27, %c0_28] : memref<216x64xf32, #tpu.memory_space<vmem>>, vector<216x64xf32>
    %cst_29 = arith.constant dense<0.000000e+00> : vector<48x64xf32>
    %43 = tpu.matmul %41, %42, %cst_29 {dimension_numbers = #tpu.dot_dimension_numbers<[1], [0], [0], [1], [0, 0, 1, 1], [], []>} : vector<48x216xf32>, vector<216x64xf32>, vector<48x64xf32> -> vector<48x64xf32>
    %44 = vector.extract_strided_slice %43 {offsets = [0, 0], sizes = [16, 64], strides = [1, 1]} : vector<48x64xf32> to vector<16x64xf32>
    %c0_30 = arith.constant 0 : index
    %c0_31 = arith.constant 0 : index
    %45 = vector.load %arg6[%c0_30, %c0_31] : memref<32x1xf32, #tpu.memory_space<vmem>>, vector<16x1xf32>
    %46 = vector.broadcast %45 : vector<16x1xf32> to vector<16x64xf32>
    %47 = arith.addf %44, %46 : vector<16x64xf32>
    %48 = arith.negf %47 : vector<16x64xf32>
    %49 = math.exp %48 : vector<16x64xf32>
    %cst_32 = arith.constant 1.000000e+00 : f32
    %50 = vector.broadcast %cst_32 : f32 to vector<16x64xf32>
    %51 = arith.addf %50, %49 : vector<16x64xf32>
    %52 = arith.divf %50, %51 : vector<16x64xf32>
    %53 = vector.extract_strided_slice %43 {offsets = [16, 0], sizes = [16, 64], strides = [1, 1]} : vector<48x64xf32> to vector<16x64xf32>
    %c16_33 = arith.constant 16 : index
    %c0_34 = arith.constant 0 : index
    %54 = vector.load %arg6[%c16_33, %c0_34] : memref<32x1xf32, #tpu.memory_space<vmem>>, vector<16x1xf32>
    %55 = vector.broadcast %54 : vector<16x1xf32> to vector<16x64xf32>
    %56 = arith.addf %53, %55 : vector<16x64xf32>
    %57 = arith.negf %56 : vector<16x64xf32>
    %58 = math.exp %57 : vector<16x64xf32>
    %cst_35 = arith.constant 1.000000e+00 : f32
    %59 = vector.broadcast %cst_35 : f32 to vector<16x64xf32>
    %60 = arith.addf %59, %58 : vector<16x64xf32>
    %61 = arith.divf %59, %60 : vector<16x64xf32>
    %62 = vector.extract_strided_slice %43 {offsets = [32, 0], sizes = [16, 64], strides = [1, 1]} : vector<48x64xf32> to vector<16x64xf32>
    %c0_36 = arith.constant 0 : index
    %c0_37 = arith.constant 0 : index
    %63 = vector.load %arg2[%c0_36, %c0_37] : memref<16x64xf32, #tpu.memory_space<vmem>>, vector<16x64xf32>
    %64 = arith.mulf %61, %63 : vector<16x64xf32>
    %c0_38 = arith.constant 0 : index
    %c0_39 = arith.constant 0 : index
    %65 = vector.load %arg10[%c0_38, %c0_39] : memref<16x64xf32, #tpu.memory_space<vmem>>, vector<16x64xf32>
    tpu.vector_store %arg10[%c0_38, %c0_39], %64 {strides = array<i32>} : memref<16x64xf32, #tpu.memory_space<vmem>>, vector<16x64xf32>,
    %c0_40 = arith.constant 0 : index
    %c0_41 = arith.constant 0 : index
    %66 = vector.load %arg10[%c0_40, %c0_41] : memref<16x64xf32, #tpu.memory_space<vmem>>, vector<16x64xf32>
    %cst_42 = arith.constant dense<0.000000e+00> : vector<16x576xf32>
    %67 = tpu.matmul %66, %0, %cst_42 {dimension_numbers = #tpu.dot_dimension_numbers<[1], [0], [0], [1], [0, 0, 1, 1], [], []>} : vector<16x64xf32>, vector<64x576xf32>, vector<16x576xf32> -> vector<16x576xf32>
    %68 = vector.extract_strided_slice %67 {offsets = [0, 0], sizes = [16, 64], strides = [1, 1]} : vector<16x576xf32> to vector<16x64xf32>
    %c72_43 = arith.constant 72 : index
    %c0_44 = arith.constant 0 : index
    %69 = vector.load %arg9[%c72_43, %c0_44] : memref<216x64xf32, #tpu.memory_space<vmem>>, vector<16x64xf32>
    tpu.vector_store %arg9[%c72_43, %c0_44], %68 {strides = array<i32>} : memref<216x64xf32, #tpu.memory_space<vmem>>, vector<16x64xf32>,
    %70 = vector.extract_strided_slice %67 {offsets = [0, 64], sizes = [16, 64], strides = [1, 1]} : vector<16x576xf32> to vector<16x64xf32>
    %c88_45 = arith.constant 88 : index
    %c0_46 = arith.constant 0 : index
    %71 = vector.load %arg9[%c88_45, %c0_46] : memref<216x64xf32, #tpu.memory_space<vmem>>, vector<16x64xf32>
    tpu.vector_store %arg9[%c88_45, %c0_46], %70 {strides = array<i32>} : memref<216x64xf32, #tpu.memory_space<vmem>>, vector<16x64xf32>,
    %72 = vector.extract_strided_slice %67 {offsets = [0, 128], sizes = [16, 64], strides = [1, 1]} : vector<16x576xf32> to vector<16x64xf32>
    %c104_47 = arith.constant 104 : index
    %c0_48 = arith.constant 0 : index
    %73 = vector.load %arg9[%c104_47, %c0_48] : memref<216x64xf32, #tpu.memory_space<vmem>>, vector<16x64xf32>
    tpu.vector_store %arg9[%c104_47, %c0_48], %72 {strides = array<i32>} : memref<216x64xf32, #tpu.memory_space<vmem>>, vector<16x64xf32>,
    %74 = vector.extract_strided_slice %67 {offsets = [0, 192], sizes = [16, 64], strides = [1, 1]} : vector<16x576xf32> to vector<16x64xf32>
    %c120_49 = arith.constant 120 : index
    %c0_50 = arith.constant 0 : index
    %75 = vector.load %arg9[%c120_49, %c0_50] : memref<216x64xf32, #tpu.memory_space<vmem>>, vector<16x64xf32>
    tpu.vector_store %arg9[%c120_49, %c0_50], %74 {strides = array<i32>} : memref<216x64xf32, #tpu.memory_space<vmem>>, vector<16x64xf32>,
    %76 = vector.extract_strided_slice %67 {offsets = [0, 256], sizes = [16, 64], strides = [1, 1]} : vector<16x576xf32> to vector<16x64xf32>
    %c136_51 = arith.constant 136 : index
    %c0_52 = arith.constant 0 : index
    %77 = vector.load %arg9[%c136_51, %c0_52] : memref<216x64xf32, #tpu.memory_space<vmem>>, vector<16x64xf32>
    tpu.vector_store %arg9[%c136_51, %c0_52], %76 {strides = array<i32>} : memref<216x64xf32, #tpu.memory_space<vmem>>, vector<16x64xf32>,
    %78 = vector.extract_strided_slice %67 {offsets = [0, 320], sizes = [16, 64], strides = [1, 1]} : vector<16x576xf32> to vector<16x64xf32>
    %c152_53 = arith.constant 152 : index
    %c0_54 = arith.constant 0 : index
    %79 = vector.load %arg9[%c152_53, %c0_54] : memref<216x64xf32, #tpu.memory_space<vmem>>, vector<16x64xf32>
    tpu.vector_store %arg9[%c152_53, %c0_54], %78 {strides = array<i32>} : memref<216x64xf32, #tpu.memory_space<vmem>>, vector<16x64xf32>,
    %80 = vector.extract_strided_slice %67 {offsets = [0, 384], sizes = [16, 64], strides = [1, 1]} : vector<16x576xf32> to vector<16x64xf32>
    %c168_55 = arith.constant 168 : index
    %c0_56 = arith.constant 0 : index
    %81 = vector.load %arg9[%c168_55, %c0_56] : memref<216x64xf32, #tpu.memory_space<vmem>>, vector<16x64xf32>
    tpu.vector_store %arg9[%c168_55, %c0_56], %80 {strides = array<i32>} : memref<216x64xf32, #tpu.memory_space<vmem>>, vector<16x64xf32>,
    %82 = vector.extract_strided_slice %67 {offsets = [0, 448], sizes = [16, 64], strides = [1, 1]} : vector<16x576xf32> to vector<16x64xf32>
    %c184_57 = arith.constant 184 : index
    %c0_58 = arith.constant 0 : index
    %83 = vector.load %arg9[%c184_57, %c0_58] : memref<216x64xf32, #tpu.memory_space<vmem>>, vector<16x64xf32>
    tpu.vector_store %arg9[%c184_57, %c0_58], %82 {strides = array<i32>} : memref<216x64xf32, #tpu.memory_space<vmem>>, vector<16x64xf32>,
    %84 = vector.extract_strided_slice %67 {offsets = [0, 512], sizes = [16, 64], strides = [1, 1]} : vector<16x576xf32> to vector<16x64xf32>
    %c200_59 = arith.constant 200 : index
    %c0_60 = arith.constant 0 : index
    %85 = vector.load %arg9[%c200_59, %c0_60] : memref<216x64xf32, #tpu.memory_space<vmem>>, vector<16x64xf32>
    tpu.vector_store %arg9[%c200_59, %c0_60], %84 {strides = array<i32>} : memref<216x64xf32, #tpu.memory_space<vmem>>, vector<16x64xf32>,
    %c0_61 = arith.constant 0 : index
    %c0_62 = arith.constant 0 : index
    %86 = vector.load %arg5[%c0_61, %c0_62] : memref<16x144xf32, #tpu.memory_space<vmem>>, vector<16x144xf32>
    %c72_63 = arith.constant 72 : index
    %c0_64 = arith.constant 0 : index
    %87 = vector.load %arg9[%c72_63, %c0_64] : memref<216x64xf32, #tpu.memory_space<vmem>>, vector<144x64xf32>
    %cst_65 = arith.constant dense<0.000000e+00> : vector<16x64xf32>
    %88 = tpu.matmul %86, %87, %cst_65 {dimension_numbers = #tpu.dot_dimension_numbers<[1], [0], [0], [1], [0, 0, 1, 1], [], []>} : vector<16x144xf32>, vector<144x64xf32>, vector<16x64xf32> -> vector<16x64xf32>
    %89 = arith.addf %62, %88 : vector<16x64xf32>
    %c0_66 = arith.constant 0 : index
    %c0_67 = arith.constant 0 : index
    %90 = vector.load %arg7[%c0_66, %c0_67] : memref<16x1xf32, #tpu.memory_space<vmem>>, vector<16x1xf32>
    %91 = vector.broadcast %90 : vector<16x1xf32> to vector<16x64xf32>
    %92 = arith.addf %89, %91 : vector<16x64xf32>
    %93 = math.tanh %92 : vector<16x64xf32>
    %c0_68 = arith.constant 0 : index
    %c0_69 = arith.constant 0 : index
    %94 = vector.load %arg2[%c0_68, %c0_69] : memref<16x64xf32, #tpu.memory_space<vmem>>, vector<16x64xf32>
    %95 = arith.subf %93, %94 : vector<16x64xf32>
    %96 = arith.mulf %52, %95 : vector<16x64xf32>
    %97 = arith.addf %94, %96 : vector<16x64xf32>
    %c0_70 = arith.constant 0 : index
    %c0_71 = arith.constant 0 : index
    %98 = vector.load %arg8[%c0_70, %c0_71] : memref<16x64xf32, #tpu.memory_space<vmem>>, vector<16x64xf32>
    tpu.vector_store %arg8[%c0_70, %c0_71], %97 {strides = array<i32>} : memref<16x64xf32, #tpu.memory_space<vmem>>, vector<16x64xf32>,
    return
  }
  func.func @transform_0(%arg0: i32) -> (i32, i32) {
    %c0_i32 = arith.constant 0 : i32
    %c0_i32_0 = arith.constant 0 : i32
    return %arg0, %c0_i32 : i32, i32
  }
  func.func @transform_1(%arg0: i32) -> (i32, i32) {
    %c0_i32 = arith.constant 0 : i32
    %c0_i32_0 = arith.constant 0 : i32
    return %arg0, %c0_i32 : i32, i32
  }
  func.func @transform_2(%arg0: i32) -> (i32, i32) {
    %c0_i32 = arith.constant 0 : i32
    %c0_i32_0 = arith.constant 0 : i32
    %c0_i32_1 = arith.constant 0 : i32
    return %c0_i32, %c0_i32_0 : i32, i32
  }
  func.func @transform_3(%arg0: i32) -> (i32, i32) {
    %c0_i32 = arith.constant 0 : i32
    %c0_i32_0 = arith.constant 0 : i32
    %c0_i32_1 = arith.constant 0 : i32
    return %c0_i32, %c0_i32_0 : i32, i32
  }
  func.func @transform_4(%arg0: i32) -> (i32, i32) {
    %c0_i32 = arith.constant 0 : i32
    %c0_i32_0 = arith.constant 0 : i32
    %c0_i32_1 = arith.constant 0 : i32
    return %c0_i32, %c0_i32_0 : i32, i32
  }
  func.func @transform_5(%arg0: i32) -> (i32, i32) {
    %c0_i32 = arith.constant 0 : i32
    %c0_i32_0 = arith.constant 0 : i32
    %c0_i32_1 = arith.constant 0 : i32
    return %c0_i32, %c0_i32_0 : i32, i32
  }
  func.func @transform_6(%arg0: i32) -> (i32, i32) {
    %c0_i32 = arith.constant 0 : i32
    %c0_i32_0 = arith.constant 0 : i32
    %c0_i32_1 = arith.constant 0 : i32
    return %c0_i32, %c0_i32_0 : i32, i32
  }
  func.func @transform_7(%arg0: i32) -> (i32, i32) {
    %c0_i32 = arith.constant 0 : i32
    %c0_i32_0 = arith.constant 0 : i32
    return %arg0, %c0_i32 : i32, i32
  }
}

</mosaic_0001>

<llo_original>
// kernel: tpu_custom_call.1
$region0: #{tpu_custom_call.1}
  #allocation0 [shape = 'u32[]', space=smem, size = 0x4, offset = 0x4, fixed_abs, tag = 'smem constant byte address 0x4 - core index']
  #allocation1 [shape = 'u32[144,128]{1,0:T(1,128)}', space=vmem, size = 0x12000, scoped, tag = 'internal scratch']
  %s0 = inlined_call_operand.hbm [shape: f32[8,128], index: 0, kind: input, shape index: {}]
  %s1 = inlined_call_operand.hbm [shape: f32[8,128], index: 1, kind: output, shape index: {}]
  %s2 = sld [smem:[#allocation0]]
  $region41: #{tpu_custom_call.1} parent=0
    _
  %s4 = ssub.s32 1, %s2
  %s5 = scalar_select 0, %s4, %s2
  $region1: #{tpu_custom_call.1} parent=0
    #allocation2 [shape = 'u8[4096]{0}', space=vmem, size = 0x1000, scoped, tag = 'input window, operand 0, single buffered']
    #allocation3 [shape = 's32[2]{0}', space=sflag, size = 0x8, scoped, tag = 'scoped memory for tpu_custom_call.1']
    #allocation4 [shape = 's32[2]{0}', space=sflag, size = 0x8, scoped, tag = 'scoped memory for tpu_custom_call.1']
    #allocation5 [shape = 'u8[4096]{0}', space=vmem, size = 0x1000, scoped, tag = 'output window, operand 0, single buffered']
    %6 = vsyncpa [#allocation3], 0
    %7 = vsyncpa [#allocation4], 0
    loop: start=0, step=1, limit=4
    $region2: #{tpu_custom_call.1} parent=1 // loop_pre_header
      _
    $region3: #{tpu_custom_call.1} parent=1 // loop_header
      %s9 = sphi 0, %s13
      %p10 = scmp.ge.s32.totalorder %s9, 4
      %s17 = sphi 0, %s17
      %s19 = sphi 0, %s17
      %s20 = sphi 0, %s19
      %s34 = sphi 0, %s20
      %s38 = sphi 0, %s38
      %s40 = sphi 0, %s38
      %s41 = sphi 0, %s40
      %s55 = sphi 0, %s41
    $region4: #{tpu_custom_call.1} parent=1 // loop_header_branch
      %12 = sbr.rel (%p10) target = $region8
    $region5: #{tpu_custom_call.1} parent=1 // loop_body
      %s14 = ssub.s32 %s9, 1
      %s15 = ssub.s32 %s9, 2
      %s16 = sadd.s32 %s9, 1
      %s18 = sadd.s32 %s17, 1
      %p21 = scmp.eq.s32.totalorder %s9, 1
      %p22 = scmp.ne.s32.totalorder %s17, %s19
      %p23 = scmp.eq.s32.totalorder %s9, 0
      %p24 = por %p22, %p23
      %p25 = scmp.ne.s32.totalorder %s17, %s19
      %p26 = scmp.eq.s32.totalorder %s14, 1
      %p27 = por %p25, %p26
      %p28 = scmp.ne.s32.totalorder %s19, %s20
      %p29 = scmp.eq.s32.totalorder %s14, 0
      %p30 = por %p28, %p29
      %p31 = scmp.ne.s32.totalorder %s19, %s20
      %p32 = scmp.eq.s32.totalorder %s15, 1
      %p33 = por %p31, %p32
      %p35 = scmp.ne.s32.totalorder %s20, %s34
      %p36 = scmp.eq.s32.totalorder %s15, 0
      %p37 = por %p35, %p36
      %s39 = sadd.s32 %s38, 1
      %p42 = scmp.eq.s32.totalorder %s9, 1
      %p43 = scmp.ne.s32.totalorder %s38, %s40
      %p44 = scmp.eq.s32.totalorder %s9, 0
      %p45 = por %p43, %p44
      %p46 = scmp.ne.s32.totalorder %s38, %s40
      %p47 = scmp.eq.s32.totalorder %s14, 1
      %p48 = por %p46, %p47
      %p49 = scmp.ne.s32.totalorder %s40, %s41
      %p50 = scmp.eq.s32.totalorder %s14, 0
      %p51 = por %p49, %p50
      %p52 = scmp.ne.s32.totalorder %s40, %s41
      %p53 = scmp.eq.s32.totalorder %s15, 1
      %p54 = por %p52, %p53
      %p56 = scmp.ne.s32.totalorder %s41, %s55
      %p57 = scmp.eq.s32.totalorder %s15, 0
      %p58 = por %p56, %p57
      %p59 = scmp.le.s32.totalorder 1, %s9
      %p60 = scmp.lt.s32.totalorder %s9, 3
      %p61 = pnand %p59, %p60
      %p62 = pneg %p61
      // Predicated region
      $region9: #{tpu_custom_call.1} parent=5 // pred_check
        _
      $region10: #{tpu_custom_call.1} parent=5 // pred_check_branch
        %64 = sbr.rel (%p61) target = $region12
      $region11: #{tpu_custom_call.1} parent=5 // pred_region
        %s65 = ssub.s32 %s9, 1
        // Predicated region
        $region13: #{tpu_custom_call.1} parent=11 // pred_check
          %p66 = pneg %p30
        $region14: #{tpu_custom_call.1} parent=11 // pred_check_branch
          %68 = sbr.rel (%p66) target = $region16
        $region15: #{tpu_custom_call.1} parent=11 // pred_region
          %s70 = ssub.s32 128, 128
          %71 = vsyncadd [#allocation3], %s70
          %s73 = sshll.u32 [#allocation2], 4
          %s74 = int_to_ptr.vmem [resolvable:$true] %s73
          %76 = dma.hbm_to_vmem [thread:$0]  %s0, 128, %s74, [#allocation3]
        $region16: #{tpu_custom_call.1} parent=11 // pred_fallthru
          _
      $region12: #{tpu_custom_call.1} parent=5 // pred_fallthru
        _
      %p77 = scmp.lt.s32.totalorder %s9, 2
      // Predicated region
      $region17: #{tpu_custom_call.1} parent=5 // pred_check
        %p78 = pneg %p77
      $region18: #{tpu_custom_call.1} parent=5 // pred_check_branch
        %80 = sbr.rel (%p78) target = $region20
      $region19: #{tpu_custom_call.1} parent=5 // pred_region
        _
      $region20: #{tpu_custom_call.1} parent=5 // pred_fallthru
        _
      %p81 = scmp.le.s32.totalorder 1, %s9
      %p82 = scmp.lt.s32.totalorder %s9, 3
      %p83 = pnand %p81, %p82
      %p84 = pneg %p83
      // Predicated region
      $region21: #{tpu_custom_call.1} parent=5 // pred_check
        _
      $region22: #{tpu_custom_call.1} parent=5 // pred_check_branch
        %86 = sbr.rel (%p83) target = $region24
      $region23: #{tpu_custom_call.1} parent=5 // pred_region
        %s87 = ssub.s32 %s9, 1
        // Predicated region
        $region25: #{tpu_custom_call.1} parent=23 // pred_check
          %p88 = pneg %p30
        $region26: #{tpu_custom_call.1} parent=23 // pred_check_branch
          %90 = sbr.rel (%p88) target = $region28
        $region27: #{tpu_custom_call.1} parent=23 // pred_region
          %91 = dma.done [#allocation3], 128
        $region28: #{tpu_custom_call.1} parent=23 // pred_fallthru
          _
        %p92 = pneg %p30
        %p93 = pneg %p27
        %p94 = pneg %p51
        %p95 = pneg %p48
        %v96 = vld [vmem:[#allocation2] sm:$0xff]
        %v97 = vadd.f32 %v96, 1.0
        %98 = vst [vmem:[#allocation5] sm:$0xff] %v97
        // Predicated region
        $region29: #{tpu_custom_call.1} parent=23 // pred_check
          %p99 = pneg %p48
        $region30: #{tpu_custom_call.1} parent=23 // pred_check_branch
          %101 = sbr.rel (%p99) target = $region32
        $region31: #{tpu_custom_call.1} parent=23 // pred_region
          %s103 = ssub.s32 128, 128
          %104 = vsyncadd [#allocation4], %s103
          %s106 = sshll.u32 [#allocation5], 4
          %s107 = int_to_ptr.vmem [resolvable:$true] %s106
          %109 = dma.vmem_to_hbm [thread:$0]  %s107, 128, %s1, [#allocation4]
        $region32: #{tpu_custom_call.1} parent=23 // pred_fallthru
          _
        // Predicated region
        $region33: #{tpu_custom_call.1} parent=23 // pred_check
          %p110 = pneg %p48
        $region34: #{tpu_custom_call.1} parent=23 // pred_check_branch
          %112 = sbr.rel (%p110) target = $region36
        $region35: #{tpu_custom_call.1} parent=23 // pred_region
          %113 = dma.done [#allocation4], 128
        $region36: #{tpu_custom_call.1} parent=23 // pred_fallthru
          _
      $region24: #{tpu_custom_call.1} parent=5 // pred_fallthru
        _
      %p114 = scmp.le.s32.totalorder 2, %s9
      // Predicated region
      $region37: #{tpu_custom_call.1} parent=5 // pred_check
        %p115 = pneg %p114
      $region38: #{tpu_custom_call.1} parent=5 // pred_check_branch
        %117 = sbr.rel (%p115) target = $region40
      $region39: #{tpu_custom_call.1} parent=5 // pred_region
        %s118 = ssub.s32 %s9, 2
      $region40: #{tpu_custom_call.1} parent=5 // pred_fallthru
        _
    $region6: #{tpu_custom_call.1} parent=1 // loop_footer
      %s13 = sadd.s32 1, %s9
    $region7: #{tpu_custom_call.1} parent=1 // loop_footer_branch
      %8 = sbr.rel target = $region3
    $region8: #{tpu_custom_call.1} parent=1 // loop_exit
      _
    %119 = vsyncpa [#allocation3], 1
    %s120 = scalar_lea.sflag [#allocation3], 1
    %121 = vsyncpa %s120, 1
    %122 = vsyncpa [#allocation4], 1
    %s123 = scalar_lea.sflag [#allocation4], 1
    %124 = vsyncpa %s123, 1

// kernel: tpu_custom_call.1
$region0: #{tpu_custom_call.1}
  #allocation0 [shape = 'u32[]', space=smem, size = 0x4, offset = 0x4, fixed_abs, tag = 'smem constant byte address 0x4 - core index']
  #allocation1 [shape = 'u32[144,128]{1,0:T(1,128)}', space=vmem, size = 0x12000, scoped, tag = 'internal scratch']
  #allocation2 [shape = 'f32[216,64]{1,0:T(8,128)}', space=vmem, size = 0x1b000, scoped, tag = 'scratch operand']
  #allocation3 [shape = 'f32[16,64]{1,0:T(8,128)}', space=vmem, size = 0x2000, scoped, tag = 'scratch operand']
  %s0 = inlined_call_operand.hbm [shape: f32[16,64], index: 0, kind: input, shape index: {}]
  %s1 = inlined_call_operand.vmem [shape: f32[32,64], index: 1, kind: input, shape index: {}]
  %s2 = inlined_call_operand.hbm [shape: f32[64,576], index: 2, kind: input, shape index: {}]
  %s3 = inlined_call_operand.hbm [shape: f32[48,216], index: 3, kind: input, shape index: {}]
  %s4 = inlined_call_operand.vmem [shape: f32[16,144], index: 4, kind: input, shape index: {}]
  %s5 = inlined_call_operand.vmem [shape: f32[32,1], index: 5, kind: input, shape index: {}]
  %s6 = inlined_call_operand.vmem [shape: f32[16,1], index: 6, kind: input, shape index: {}]
  %s7 = inlined_call_operand.hbm [shape: f32[32,64], index: 7, kind: output, shape index: {}]
  %s8 = sld [smem:[#allocation0]]
  $region73: #{tpu_custom_call.1} parent=0
    _
  %s10 = ssub.s32 1, %s8
  %s11 = scalar_select 0, %s10, %s8
  $region1: #{tpu_custom_call.1} parent=0
    #allocation4 [shape = 'u8[8192]{0}', space=vmem, size = 0x2000, scoped, tag = 'input window, operand 0']
    #allocation5 [shape = 's32[2]{0}', space=sflag, size = 0x8, scoped, tag = 'scoped memory for tpu_custom_call.1']
    #allocation6 [shape = 's32[2]{0}', space=sflag, size = 0x8, scoped, tag = 'scoped memory for tpu_custom_call.1']
    #allocation7 [shape = 'u8[163840]{0}', space=vmem, size = 0x28000, scoped, tag = 'input window, operand 2, single buffered']
    #allocation8 [shape = 's32[1]{0}', space=sflag, size = 0x4, scoped, tag = 'scoped memory for tpu_custom_call.1']
    #allocation9 [shape = 'u8[49152]{0}', space=vmem, size = 0xc000, scoped, tag = 'input window, operand 3, single buffered']
    #allocation10 [shape = 'u8[16384]{0}', space=vmem, size = 0x4000, scoped, tag = 'output window, operand 0']
    %12 = vsyncpa [#allocation5], 0
    %s13 = scalar_lea.sflag [#allocation5], 1
    %14 = vsyncpa %s13, 0
    %15 = vsyncpa [#allocation8], 0
    %16 = vsyncpa [#allocation6], 0
    %s17 = scalar_lea.sflag [#allocation6], 1
    %18 = vsyncpa %s17, 0
    loop: start=0, step=1, limit=4
    $region2: #{tpu_custom_call.1} parent=1 // loop_pre_header
      _
    $region3: #{tpu_custom_call.1} parent=1 // loop_header
      %s20 = sphi 0, %s24
      %p21 = scmp.ge.s32.totalorder %s20, 4
      %s30 = sphi 0, %s32
      %s33 = sphi 0, %s30
      %s34 = sphi 0, %s33
      %s50 = sphi 0, %s34
      %s56 = sphi 0, %s58
      %s59 = sphi 0, %s56
      %s60 = sphi 0, %s59
      %s76 = sphi 0, %s60
      %s80 = sphi 0, %s80
      %s82 = sphi 0, %s80
      %s83 = sphi 0, %s82
      %s97 = sphi 0, %s83
      %s101 = sphi 0, %s101
      %s103 = sphi 0, %s101
      %s104 = sphi 0, %s103
      %s118 = sphi 0, %s104
      %s122 = sphi 0, %s122
      %s124 = sphi 0, %s122
      %s125 = sphi 0, %s124
      %s139 = sphi 0, %s125
      %s143 = sphi 0, %s143
      %s145 = sphi 0, %s143
      %s146 = sphi 0, %s145
      %s160 = sphi 0, %s146
      %s164 = sphi 0, %s164
      %s166 = sphi 0, %s164
      %s167 = sphi 0, %s166
      %s181 = sphi 0, %s167
      %s187 = sphi 0, %s189
      %s190 = sphi 0, %s187
      %s191 = sphi 0, %s190
      %s207 = sphi 0, %s191
    $region4: #{tpu_custom_call.1} parent=1 // loop_header_branch
      %23 = sbr.rel (%p21) target = $region8
    $region5: #{tpu_custom_call.1} parent=1 // loop_body
      %s25 = ssub.s32 %s20, 1
      %s26 = ssub.s32 %s20, 2
      %s27 = sadd.s32 %s20, 1
      %s28 = ssub.s32 %s20, %s27
      %p29 = scmp.eq.s32.totalorder %s28, 0
      %s31 = sadd.s32 %s30, 1
      %s32 = scalar_select %p29, %s30, %s31
      %p35 = pneg %p29
      %p36 = scmp.eq.s32.totalorder %s20, 1
      %p37 = por %p35, %p36
      %p38 = scmp.ne.s32.totalorder %s30, %s33
      %p39 = scmp.eq.s32.totalorder %s20, 0
      %p40 = por %p38, %p39
      %p41 = scmp.ne.s32.totalorder %s30, %s33
      %p42 = scmp.eq.s32.totalorder %s25, 1
      %p43 = por %p41, %p42
      %p44 = scmp.ne.s32.totalorder %s33, %s34
      %p45 = scmp.eq.s32.totalorder %s25, 0
      %p46 = por %p44, %p45
      %p47 = scmp.ne.s32.totalorder %s33, %s34
      %p48 = scmp.eq.s32.totalorder %s26, 1
      %p49 = por %p47, %p48
      %p51 = scmp.ne.s32.totalorder %s34, %s50
      %p52 = scmp.eq.s32.totalorder %s26, 0
      %p53 = por %p51, %p52
      %s54 = ssub.s32 %s20, %s27
      %p55 = scmp.eq.s32.totalorder %s54, 0
      %s57 = sadd.s32 %s56, 1
      %s58 = scalar_select %p55, %s56, %s57
      %p61 = pneg %p55
      %p62 = scmp.eq.s32.totalorder %s20, 1
      %p63 = por %p61, %p62
      %p64 = scmp.ne.s32.totalorder %s56, %s59
      %p65 = scmp.eq.s32.totalorder %s20, 0
      %p66 = por %p64, %p65
      %p67 = scmp.ne.s32.totalorder %s56, %s59
      %p68 = scmp.eq.s32.totalorder %s25, 1
      %p69 = por %p67, %p68
      %p70 = scmp.ne.s32.totalorder %s59, %s60
      %p71 = scmp.eq.s32.totalorder %s25, 0
      %p72 = por %p70, %p71
      %p73 = scmp.ne.s32.totalorder %s59, %s60
      %p74 = scmp.eq.s32.totalorder %s26, 1
      %p75 = por %p73, %p74
      %p77 = scmp.ne.s32.totalorder %s60, %s76
      %p78 = scmp.eq.s32.totalorder %s26, 0
      %p79 = por %p77, %p78
      %s81 = sadd.s32 %s80, 1
      %p84 = scmp.eq.s32.totalorder %s20, 1
      %p85 = scmp.ne.s32.totalorder %s80, %s82
      %p86 = scmp.eq.s32.totalorder %s20, 0
      %p87 = por %p85, %p86
      %p88 = scmp.ne.s32.totalorder %s80, %s82
      %p89 = scmp.eq.s32.totalorder %s25, 1
      %p90 = por %p88, %p89
      %p91 = scmp.ne.s32.totalorder %s82, %s83
      %p92 = scmp.eq.s32.totalorder %s25, 0
      %p93 = por %p91, %p92
      %p94 = scmp.ne.s32.totalorder %s82, %s83
      %p95 = scmp.eq.s32.totalorder %s26, 1
      %p96 = por %p94, %p95
      %p98 = scmp.ne.s32.totalorder %s83, %s97
      %p99 = scmp.eq.s32.totalorder %s26, 0
      %p100 = por %p98, %p99
      %s102 = sadd.s32 %s101, 1
      %p105 = scmp.eq.s32.totalorder %s20, 1
      %p106 = scmp.ne.s32.totalorder %s101, %s103
      %p107 = scmp.eq.s32.totalorder %s20, 0
      %p108 = por %p106, %p107
      %p109 = scmp.ne.s32.totalorder %s101, %s103
      %p110 = scmp.eq.s32.totalorder %s25, 1
      %p111 = por %p109, %p110
      %p112 = scmp.ne.s32.totalorder %s103, %s104
      %p113 = scmp.eq.s32.totalorder %s25, 0
      %p114 = por %p112, %p113
      %p115 = scmp.ne.s32.totalorder %s103, %s104
      %p116 = scmp.eq.s32.totalorder %s26, 1
      %p117 = por %p115, %p116
      %p119 = scmp.ne.s32.totalorder %s104, %s118
      %p120 = scmp.eq.s32.totalorder %s26, 0
      %p121 = por %p119, %p120
      %s123 = sadd.s32 %s122, 1
      %p126 = scmp.eq.s32.totalorder %s20, 1
      %p127 = scmp.ne.s32.totalorder %s122, %s124
      %p128 = scmp.eq.s32.totalorder %s20, 0
      %p129 = por %p127, %p128
      %p130 = scmp.ne.s32.totalorder %s122, %s124
      %p131 = scmp.eq.s32.totalorder %s25, 1
      %p132 = por %p130, %p131
      %p133 = scmp.ne.s32.totalorder %s124, %s125
      %p134 = scmp.eq.s32.totalorder %s25, 0
      %p135 = por %p133, %p134
      %p136 = scmp.ne.s32.totalorder %s124, %s125
      %p137 = scmp.eq.s32.totalorder %s26, 1
      %p138 = por %p136, %p137
      %p140 = scmp.ne.s32.totalorder %s125, %s139
      %p141 = scmp.eq.s32.totalorder %s26, 0
      %p142 = por %p140, %p141
      %s144 = sadd.s32 %s143, 1
      %p147 = scmp.eq.s32.totalorder %s20, 1
      %p148 = scmp.ne.s32.totalorder %s143, %s145
      %p149 = scmp.eq.s32.totalorder %s20, 0
      %p150 = por %p148, %p149
      %p151 = scmp.ne.s32.totalorder %s143, %s145
      %p152 = scmp.eq.s32.totalorder %s25, 1
      %p153 = por %p151, %p152
      %p154 = scmp.ne.s32.totalorder %s145, %s146
      %p155 = scmp.eq.s32.totalorder %s25, 0
      %p156 = por %p154, %p155
      %p157 = scmp.ne.s32.totalorder %s145, %s146
      %p158 = scmp.eq.s32.totalorder %s26, 1
      %p159 = por %p157, %p158
      %p161 = scmp.ne.s32.totalorder %s146, %s160
      %p162 = scmp.eq.s32.totalorder %s26, 0
      %p163 = por %p161, %p162
      %s165 = sadd.s32 %s164, 1
      %p168 = scmp.eq.s32.totalorder %s20, 1
      %p169 = scmp.ne.s32.totalorder %s164, %s166
      %p170 = scmp.eq.s32.totalorder %s20, 0
      %p171 = por %p169, %p170
      %p172 = scmp.ne.s32.totalorder %s164, %s166
      %p173 = scmp.eq.s32.totalorder %s25, 1
      %p174 = por %p172, %p173
      %p175 = scmp.ne.s32.totalorder %s166, %s167
      %p176 = scmp.eq.s32.totalorder %s25, 0
      %p177 = por %p175, %p176
      %p178 = scmp.ne.s32.totalorder %s166, %s167
      %p179 = scmp.eq.s32.totalorder %s26, 1
      %p180 = por %p178, %p179
      %p182 = scmp.ne.s32.totalorder %s167, %s181
      %p183 = scmp.eq.s32.totalorder %s26, 0
      %p184 = por %p182, %p183
      %s185 = ssub.s32 %s20, %s27
      %p186 = scmp.eq.s32.totalorder %s185, 0
      %s188 = sadd.s32 %s187, 1
      %s189 = scalar_select %p186, %s187, %s188
      %p192 = pneg %p186
      %p193 = scmp.eq.s32.totalorder %s20, 1
      %p194 = por %p192, %p193
      %p195 = scmp.ne.s32.totalorder %s187, %s190
      %p196 = scmp.eq.s32.totalorder %s20, 0
      %p197 = por %p195, %p196
      %p198 = scmp.ne.s32.totalorder %s187, %s190
      %p199 = scmp.eq.s32.totalorder %s25, 1
      %p200 = por %p198, %p199
      %p201 = scmp.ne.s32.totalorder %s190, %s191
      %p202 = scmp.eq.s32.totalorder %s25, 0
      %p203 = por %p201, %p202
      %p204 = scmp.ne.s32.totalorder %s190, %s191
      %p205 = scmp.eq.s32.totalorder %s26, 1
      %p206 = por %p204, %p205
      %p208 = scmp.ne.s32.totalorder %s191, %s207
      %p209 = scmp.eq.s32.totalorder %s26, 0
      %p210 = por %p208, %p209
      %p211 = scmp.le.s32.totalorder 1, %s20
      %p212 = scmp.lt.s32.totalorder %s20, 3
      %p213 = pnand %p211, %p212
      %p214 = pneg %p213
      // Predicated region
      $region9: #{tpu_custom_call.1} parent=5 // pred_check
        _
      $region10: #{tpu_custom_call.1} parent=5 // pred_check_branch
        %216 = sbr.rel (%p213) target = $region12
      $region11: #{tpu_custom_call.1} parent=5 // pred_region
        %s217 = ssub.s32 %s20, 1
        // Predicated region
        $region13: #{tpu_custom_call.1} parent=11 // pred_check
          %p218 = pneg %p93
        $region14: #{tpu_custom_call.1} parent=11 // pred_check_branch
          %220 = sbr.rel (%p218) target = $region16
        $region15: #{tpu_custom_call.1} parent=11 // pred_region
          %s222 = ssub.s32 5120, 5120
          %223 = vsyncadd [#allocation8], %s222
          %s224 = sshll.u32 [#allocation7], 4
          %s225 = int_to_ptr.vmem [resolvable:$true] %s224
          %230 = dma.hbm_to_vmem [thread:$0]  %s2, 5120, %s225, [#allocation8], 640, 640, 40
        $region16: #{tpu_custom_call.1} parent=11 // pred_fallthru
          _
        // Predicated region
        $region17: #{tpu_custom_call.1} parent=11 // pred_check
          %p231 = pneg %p114
        $region18: #{tpu_custom_call.1} parent=11 // pred_check_branch
          %233 = sbr.rel (%p231) target = $region20
        $region19: #{tpu_custom_call.1} parent=11 // pred_region
          %s235 = ssub.s32 1536, 1536
          %236 = vsyncadd [#allocation8], %s235
          %s237 = sshll.u32 [#allocation9], 4
          %s238 = int_to_ptr.vmem [resolvable:$true] %s237
          %243 = dma.hbm_to_vmem [thread:$0]  %s3, 1536, %s238, [#allocation8], 256, 256, 16
        $region20: #{tpu_custom_call.1} parent=11 // pred_fallthru
          _
        // Predicated region
        $region21: #{tpu_custom_call.1} parent=11 // pred_check
          %p244 = pneg %p135
        $region22: #{tpu_custom_call.1} parent=11 // pred_check_branch
          %246 = sbr.rel (%p244) target = $region24
        $region23: #{tpu_custom_call.1} parent=11 // pred_region
          _
        $region24: #{tpu_custom_call.1} parent=11 // pred_fallthru
          _
        // Predicated region
        $region25: #{tpu_custom_call.1} parent=11 // pred_check
          %p247 = pneg %p156
        $region26: #{tpu_custom_call.1} parent=11 // pred_check_branch
          %249 = sbr.rel (%p247) target = $region28
        $region27: #{tpu_custom_call.1} parent=11 // pred_region
          _
        $region28: #{tpu_custom_call.1} parent=11 // pred_fallthru
          _
        // Predicated region
        $region29: #{tpu_custom_call.1} parent=11 // pred_check
          %p250 = pneg %p177
        $region30: #{tpu_custom_call.1} parent=11 // pred_check_branch
          %252 = sbr.rel (%p250) target = $region32
        $region31: #{tpu_custom_call.1} parent=11 // pred_region
          _
        $region32: #{tpu_custom_call.1} parent=11 // pred_fallthru
          _
      $region12: #{tpu_custom_call.1} parent=5 // pred_fallthru
        _
      %p253 = scmp.lt.s32.totalorder %s20, 2
      // Predicated region
      $region33: #{tpu_custom_call.1} parent=5 // pred_check
        %p254 = pneg %p253
      $region34: #{tpu_custom_call.1} parent=5 // pred_check_branch
        %256 = sbr.rel (%p254) target = $region36
      $region35: #{tpu_custom_call.1} parent=5 // pred_region
        // Predicated region
        $region37: #{tpu_custom_call.1} parent=35 // pred_check
          %p257 = pneg %p40
        $region38: #{tpu_custom_call.1} parent=35 // pred_check_branch
          %259 = sbr.rel (%p257) target = $region40
        $region39: #{tpu_custom_call.1} parent=35 // pred_region
          %s260 = sand.u32 %s30, 1
          %s261 = scalar_lea.sflag [#allocation5], %s260
          %s262 = sand.u32 %s30, 1
          %s263 = smul.addr %s262, 8
          %s264 = scalar_lea.vmem [#allocation4], %s263
          %s266 = ssub.s32 128, 128
          %267 = vsyncadd %s261, %s266
          %s268 = smul.addr %s20, 128
          %s269 = scalar_lea.hbm %s0, %s268
          %s271 = sshll.u32 %s264, 4
          %s272 = int_to_ptr.vmem [resolvable:$true] %s271
          %274 = dma.hbm_to_vmem [thread:$0]  %s269, 128, %s272, %s261
        $region40: #{tpu_custom_call.1} parent=35 // pred_fallthru
          _
        // Predicated region
        $region41: #{tpu_custom_call.1} parent=35 // pred_check
          %p275 = pneg %p66
        $region42: #{tpu_custom_call.1} parent=35 // pred_check_branch
          %277 = sbr.rel (%p275) target = $region44
        $region43: #{tpu_custom_call.1} parent=35 // pred_region
          %s278 = smul.u32 2, %s20
          %p279 = scmp.lt.s32.totalorder %s278, 3
          %s280 = scalar_select %p279, %s278, 3
          %s281 = smul.addr %s280, 8
          %s282 = scalar_lea.vmem %s1, %s281
          %s283 = smul.u32 2, %s20
        $region44: #{tpu_custom_call.1} parent=35 // pred_fallthru
          _
      $region36: #{tpu_custom_call.1} parent=5 // pred_fallthru
        _
      %p284 = scmp.le.s32.totalorder 1, %s20
      %p285 = scmp.lt.s32.totalorder %s20, 3
      %p286 = pnand %p284, %p285
      %p287 = pneg %p286
      // Predicated region
      $region45: #{tpu_custom_call.1} parent=5 // pred_check
        _
      $region46: #{tpu_custom_call.1} parent=5 // pred_check_branch
        %289 = sbr.rel (%p286) target = $region48
      $region47: #{tpu_custom_call.1} parent=5 // pred_region
        %s290 = ssub.s32 %s20, 1
        %s291 = sand.u32 %s33, 1
        %s292 = scalar_lea.sflag [#allocation5], %s291
        %s293 = sand.u32 %s33, 1
        %s294 = smul.addr %s293, 8
        %s295 = scalar_lea.vmem [#allocation4], %s294
        // Predicated region
        $region49: #{tpu_custom_call.1} parent=47 // pred_check
          %p296 = pneg %p46
        $region50: #{tpu_custom_call.1} parent=47 // pred_check_branch
          %298 = sbr.rel (%p296) target = $region52
        $region51: #{tpu_custom_call.1} parent=47 // pred_region
          %299 = dma.done %s292, 128
        $region52: #{tpu_custom_call.1} parent=47 // pred_fallthru
          _
        // Predicated region
        $region53: #{tpu_custom_call.1} parent=47 // pred_check
          %p300 = pneg %p93
        $region54: #{tpu_custom_call.1} parent=47 // pred_check_branch
          %302 = sbr.rel (%p300) target = $region56
        $region55: #{tpu_custom_call.1} parent=47 // pred_region
          %303 = dma.done [#allocation8], 5120
        $region56: #{tpu_custom_call.1} parent=47 // pred_fallthru
          _
        // Predicated region
        $region57: #{tpu_custom_call.1} parent=47 // pred_check
          %p304 = pneg %p114
        $region58: #{tpu_custom_call.1} parent=47 // pred_check_branch
          %306 = sbr.rel (%p304) target = $region60
        $region59: #{tpu_custom_call.1} parent=47 // pred_region
          %307 = dma.done [#allocation8], 1536
        $region60: #{tpu_custom_call.1} parent=47 // pred_fallthru
          _
        %s308 = sand.u32 %s33, 1
        %s309 = scalar_lea.sflag [#allocation5], %s308
        %s310 = sand.u32 %s33, 1
        %s311 = smul.addr %s310, 8
        %s312 = scalar_lea.vmem [#allocation4], %s311
        %p313 = pneg %p46
        %p314 = pneg %p43
        %s315 = smul.u32 2, %s25
        %p316 = scmp.lt.s32.totalorder %s315, 3
        %s317 = scalar_select %p316, %s315, 3
        %s318 = smul.addr %s317, 8
        %s319 = scalar_lea.vmem %s1, %s318
        %p320 = pneg %p72
        %p321 = pneg %p69
        %p322 = pneg %p93
        %p323 = pneg %p90
        %p324 = pneg %p114
        %p325 = pneg %p111
        %p326 = pneg %p135
        %p327 = pneg %p132
        %p328 = pneg %p156
        %p329 = pneg %p153
        %p330 = pneg %p177
        %p331 = pneg %p174
        %p332 = pneg %p203
        %p333 = pneg %p200
        %s334 = sand.u32 %s190, 1
        %s335 = scalar_lea.sflag [#allocation6], %s334
        %s336 = sand.u32 %s190, 1
        %s337 = smul.addr %s336, 16
        %s338 = scalar_lea.vmem [#allocation10], %s337
        %s339 = smul.u32 2, %s25
        %p340 = scmp.lt.s32.totalorder %s339, 3
        %s341 = scalar_select %p340, %s339, 3
        %s342 = smul.addr %s341, 8
        %s343 = scalar_lea.vmem %s1, %s342
        %s344 = smul.u32 2, %s25
        %s345 = smul.u32 2, %s25
        %v346 = vld [vmem:[#allocation7] sm:$0xff]
        %v347 = vld [vmem:[#allocation7 + $0x8] sm:$0xff]
        %v348 = vld [vmem:[#allocation7 + $0x10] sm:$0xff]
        %v349 = vld [vmem:[#allocation7 + $0x18] sm:$0xff]
        %v350 = vld [vmem:[#allocation7 + $0x20] sm:$0xff]
        %v351 = vld [vmem:[#allocation7 + $0x28] sm:$0xff]
        %v352 = vld [vmem:[#allocation7 + $0x30] sm:$0xff]
        %v353 = vld [vmem:[#allocation7 + $0x38] sm:$0xff]
        %v354 = vld [vmem:[#allocation7 + $0x40] sm:$0xff]
        %v355 = vld [vmem:[#allocation7 + $0x48] sm:$0xff]
        %v356 = vld [vmem:[#allocation7 + $0x50] sm:$0xff]
        %v357 = vld [vmem:[#allocation7 + $0x58] sm:$0xff]
        %v358 = vld [vmem:[#allocation7 + $0x60] sm:$0xff]
        %v359 = vld [vmem:[#allocation7 + $0x68] sm:$0xff]
        %v360 = vld [vmem:[#allocation7 + $0x70] sm:$0xff]
        %v361 = vld [vmem:[#allocation7 + $0x78] sm:$0xff]
        %v362 = vld [vmem:[#allocation7 + $0x80] sm:$0xff]
        %v363 = vld [vmem:[#allocation7 + $0x88] sm:$0xff]
        %v364 = vld [vmem:[#allocation7 + $0x90] sm:$0xff]
        %v365 = vld [vmem:[#allocation7 + $0x98] sm:$0xff]
        %v366 = vld [vmem:[#allocation7 + $0xa0] sm:$0xff]
        %v367 = vld [vmem:[#allocation7 + $0xa8] sm:$0xff]
        %v368 = vld [vmem:[#allocation7 + $0xb0] sm:$0xff]
        %v369 = vld [vmem:[#allocation7 + $0xb8] sm:$0xff]
        %v370 = vld [vmem:[#allocation7 + $0xc0] sm:$0xff]
        %v371 = vld [vmem:[#allocation7 + $0xc8] sm:$0xff]
        %v372 = vld [vmem:[#allocation7 + $0xd0] sm:$0xff]
        %v373 = vld [vmem:[#allocation7 + $0xd8] sm:$0xff]
        %v374 = vld [vmem:[#allocation7 + $0xe0] sm:$0xff]
        %v375 = vld [vmem:[#allocation7 + $0xe8] sm:$0xff]
        %v376 = vld [vmem:[#allocation7 + $0xf0] sm:$0xff]
        %v377 = vld [vmem:[#allocation7 + $0xf8] sm:$0xff]
        %v378 = vld [vmem:[#allocation7 + $0x100] sm:$0xff]
        %v379 = vld [vmem:[#allocation7 + $0x108] sm:$0xff]
        %v380 = vld [vmem:[#allocation7 + $0x110] sm:$0xff]
        %v381 = vld [vmem:[#allocation7 + $0x118] sm:$0xff]
        %v382 = vld [vmem:[#allocation7 + $0x120] sm:$0xff]
        %v383 = vld [vmem:[#allocation7 + $0x128] sm:$0xff]
        %v384 = vld [vmem:[#allocation7 + $0x130] sm:$0xff]
        %v385 = vld [vmem:[#allocation7 + $0x138] sm:$0xff]
        %v386 = vld [vmem:[%s295] sm:$0xff]
        %vm387 = vcmask 523264
        %v389 = vsel %vm387, %v386, 0
        %391 = vmatprep.subr.mxu0 %v347
        %392 = vmatpush1.msra.mxu0 %v346
        %393 = vmatprep.subr.mxu0 %v352
        %394 = vmatpush1.msra.mxu0 %v351
        %395 = vmatprep.subr.mxu0 %v357
        %396 = vmatpush1.msra.mxu0 %v356
        %397 = vmatprep.subr.mxu0 %v362
        %398 = vmatpush1.msra.mxu0 %v361
        %399 = vmatprep.subr.mxu0 %v367
        %400 = vmatpush1.msra.mxu0 %v366
        %401 = vmatprep.subr.mxu0 %v372
        %402 = vmatpush1.msra.mxu0 %v371
        %403 = vmatprep.subr.mxu0 %v377
        %404 = vmatpush1.msra.mxu0 %v376
        %405 = vmatprep.subr.mxu0 %v382
        %406 = vmatpush1.msra.mxu0 %v381
        %407 = vmatprep.subr.mxu0 0.0
        %408 = vmatpush1.msra.mxu0 0.0
        %409 = vmatprep.subr.mxu0 0.0
        %410 = vmatpush1.msra.mxu0 0.0
        %411 = vmatprep.subr.mxu0 0.0
        %412 = vmatpush1.msra.mxu0 0.0
        %413 = vmatprep.subr.mxu0 0.0
        %414 = vmatpush1.msra.mxu0 0.0
        %415 = vmatprep.subr.mxu0 0.0
        %416 = vmatpush1.msra.mxu0 0.0
        %417 = vmatprep.subr.mxu0 0.0
        %418 = vmatpush1.msra.mxu0 0.0
        %419 = vmatprep.subr.mxu0 0.0
        %420 = vmatpush1.msra.mxu0 0.0
        %421 = vmatprep.subr.mxu0 0.0
        %422 = vmatpush1.msra.mxu0 0.0
        %423 = vmatprep.subr.mxu0 0.0
        %424 = vmatpush1.msra.mxu0 0.0
        %425 = vmatprep.subr.mxu0 0.0
        %426 = vmatpush1.msra.mxu0 0.0
        %427 = vmatprep.subr.mxu0 0.0
        %428 = vmatpush1.msra.mxu0 0.0
        %429 = vmatprep.subr.mxu0 0.0
        %430 = vmatpush1.msra.mxu0 0.0
        %431 = vmatprep.subr.mxu0 0.0
        %432 = vmatpush1.msra.mxu0 0.0
        %433 = vmatprep.subr.mxu0 0.0
        %434 = vmatpush1.msra.mxu0 0.0
        %435 = vmatprep.subr.mxu0 0.0
        %436 = vmatpush1.msra.mxu0 0.0
        %437 = vmatprep.subr.mxu0 0.0
        %438 = vmatpush1.msra.mxu0 0.0
        %439 = vmatprep.subr.mxu0 0.0
        %440 = vmatpush1.msra.mxu0 0.0
        %441 = vmatprep.subr.mxu0 0.0
        %442 = vmatpush1.msra.mxu0 0.0
        %443 = vmatprep.subr.mxu0 0.0
        %444 = vmatpush1.msra.mxu0 0.0
        %445 = vmatprep.subr.mxu0 0.0
        %446 = vmatpush1.msra.mxu0 0.0
        %447 = vmatprep.subr.mxu0 0.0
        %448 = vmatpush1.msra.mxu0 0.0
        %449 = vmatprep.subr.mxu0 0.0
        %450 = vmatpush1.msra.mxu0 0.0
        %451 = vmatprep.subr.mxu0 0.0
        %452 = vmatpush1.msra.mxu0 0.0
        %453 = vmatprep.subr.mxu0 0.0
        %454 = vmatpush1.msra.mxu0 0.0
        %455 = vmatprep.mubr.f32.mxu0 0.0
        %456 = vmatmul.mubr.f32.gmra.mrb[0].mxu0 %v389
        %v457 = vpop.f32.mrb[0].mxu0
        %v458 = vadd.f32 0.0, %v457
        %v459 = vpop.f32.mrb[0].mxu0
        %v460 = vadd.f32 0.0, %v459
        %461 = vdwg.mxu0
        %462 = vmatprep.subr.mxu0 %v349
        %463 = vmatpush1.msra.mxu0 %v348
        %464 = vmatprep.subr.mxu0 %v354
        %465 = vmatpush1.msra.mxu0 %v353
        %466 = vmatprep.subr.mxu0 %v359
        %467 = vmatpush1.msra.mxu0 %v358
        %468 = vmatprep.subr.mxu0 %v364
        %469 = vmatpush1.msra.mxu0 %v363
        %470 = vmatprep.subr.mxu0 %v369
        %471 = vmatpush1.msra.mxu0 %v368
        %472 = vmatprep.subr.mxu0 %v374
        %473 = vmatpush1.msra.mxu0 %v373
        %474 = vmatprep.subr.mxu0 %v379
        %475 = vmatpush1.msra.mxu0 %v378
        %476 = vmatprep.subr.mxu0 %v384
        %477 = vmatpush1.msra.mxu0 %v383
        %478 = vmatprep.subr.mxu0 0.0
        %479 = vmatpush1.msra.mxu0 0.0
        %480 = vmatprep.subr.mxu0 0.0
        %481 = vmatpush1.msra.mxu0 0.0
        %482 = vmatprep.subr.mxu0 0.0
        %483 = vmatpush1.msra.mxu0 0.0
        %484 = vmatprep.subr.mxu0 0.0
        %485 = vmatpush1.msra.mxu0 0.0
        %486 = vmatprep.subr.mxu0 0.0
        %487 = vmatpush1.msra.mxu0 0.0
        %488 = vmatprep.subr.mxu0 0.0
        %489 = vmatpush1.msra.mxu0 0.0
        %490 = vmatprep.subr.mxu0 0.0
        %491 = vmatpush1.msra.mxu0 0.0
        %492 = vmatprep.subr.mxu0 0.0
        %493 = vmatpush1.msra.mxu0 0.0
        %494 = vmatprep.subr.mxu0 0.0
        %495 = vmatpush1.msra.mxu0 0.0
        %496 = vmatprep.subr.mxu0 0.0
        %497 = vmatpush1.msra.mxu0 0.0
        %498 = vmatprep.subr.mxu0 0.0
        %499 = vmatpush1.msra.mxu0 0.0
        %500 = vmatprep.subr.mxu0 0.0
        %501 = vmatpush1.msra.mxu0 0.0
        %502 = vmatprep.subr.mxu0 0.0
        %503 = vmatpush1.msra.mxu0 0.0
        %504 = vmatprep.subr.mxu0 0.0
        %505 = vmatpush1.msra.mxu0 0.0
        %506 = vmatprep.subr.mxu0 0.0
        %507 = vmatpush1.msra.mxu0 0.0
        %508 = vmatprep.subr.mxu0 0.0
        %509 = vmatpush1.msra.mxu0 0.0
        %510 = vmatprep.subr.mxu0 0.0
        %511 = vmatpush1.msra.mxu0 0.0
        %512 = vmatprep.subr.mxu0 0.0
        %513 = vmatpush1.msra.mxu0 0.0
        %514 = vmatprep.subr.mxu0 0.0
        %515 = vmatpush1.msra.mxu0 0.0
        %516 = vmatprep.subr.mxu0 0.0
        %517 = vmatpush1.msra.mxu0 0.0
        %518 = vmatprep.subr.mxu0 0.0
        %519 = vmatpush1.msra.mxu0 0.0
        %520 = vmatprep.subr.mxu0 0.0
        %521 = vmatpush1.msra.mxu0 0.0
        %522 = vmatprep.subr.mxu0 0.0
        %523 = vmatpush1.msra.mxu0 0.0
        %524 = vmatprep.subr.mxu0 0.0
        %525 = vmatpush1.msra.mxu0 0.0
        %526 = vmatprep.mubr.f32.mxu0 0.0
        %527 = vmatmul.mubr.f32.gmra.mrb[0].mxu0 %v389
        %v528 = vpop.f32.mrb[0].mxu0
        %v529 = vadd.f32 0.0, %v528
        %v530 = vpop.f32.mrb[0].mxu0
        %v531 = vadd.f32 0.0, %v530
        %532 = vdwg.mxu0
        %533 = vmatprep.subr.mxu0 0.0
        %534 = vmatpush1.msra.mxu0 %v350
        %535 = vmatprep.subr.mxu0 0.0
        %536 = vmatpush1.msra.mxu0 %v355
        %537 = vmatprep.subr.mxu0 0.0
        %538 = vmatpush1.msra.mxu0 %v360
        %539 = vmatprep.subr.mxu0 0.0
        %540 = vmatpush1.msra.mxu0 %v365
        %541 = vmatprep.subr.mxu0 0.0
        %542 = vmatpush1.msra.mxu0 %v370
        %543 = vmatprep.subr.mxu0 0.0
        %544 = vmatpush1.msra.mxu0 %v375
        %545 = vmatprep.subr.mxu0 0.0
        %546 = vmatpush1.msra.mxu0 %v380
        %547 = vmatprep.subr.mxu0 0.0
        %548 = vmatpush1.msra.mxu0 %v385
        %549 = vmatprep.subr.mxu0 0.0
        %550 = vmatpush1.msra.mxu0 0.0
        %551 = vmatprep.subr.mxu0 0.0
        %552 = vmatpush1.msra.mxu0 0.0
        %553 = vmatprep.subr.mxu0 0.0
        %554 = vmatpush1.msra.mxu0 0.0
        %555 = vmatprep.subr.mxu0 0.0
        %556 = vmatpush1.msra.mxu0 0.0
        %557 = vmatprep.subr.mxu0 0.0
        %558 = vmatpush1.msra.mxu0 0.0
        %559 = vmatprep.subr.mxu0 0.0
        %560 = vmatpush1.msra.mxu0 0.0
        %561 = vmatprep.subr.mxu0 0.0
        %562 = vmatpush1.msra.mxu0 0.0
        %563 = vmatprep.subr.mxu0 0.0
        %564 = vmatpush1.msra.mxu0 0.0
        %565 = vmatprep.subr.mxu0 0.0
        %566 = vmatpush1.msra.mxu0 0.0
        %567 = vmatprep.subr.mxu0 0.0
        %568 = vmatpush1.msra.mxu0 0.0
        %569 = vmatprep.subr.mxu0 0.0
        %570 = vmatpush1.msra.mxu0 0.0
        %571 = vmatprep.subr.mxu0 0.0
        %572 = vmatpush1.msra.mxu0 0.0
        %573 = vmatprep.subr.mxu0 0.0
        %574 = vmatpush1.msra.mxu0 0.0
        %575 = vmatprep.subr.mxu0 0.0
        %576 = vmatpush1.msra.mxu0 0.0
        %577 = vmatprep.subr.mxu0 0.0
        %578 = vmatpush1.msra.mxu0 0.0
        %579 = vmatprep.subr.mxu0 0.0
        %580 = vmatpush1.msra.mxu0 0.0
        %581 = vmatprep.subr.mxu0 0.0
        %582 = vmatpush1.msra.mxu0 0.0
        %583 = vmatprep.subr.mxu0 0.0
        %584 = vmatpush1.msra.mxu0 0.0
        %585 = vmatprep.subr.mxu0 0.0
        %586 = vmatpush1.msra.mxu0 0.0
        %587 = vmatprep.subr.mxu0 0.0
        %588 = vmatpush1.msra.mxu0 0.0
        %589 = vmatprep.subr.mxu0 0.0
        %590 = vmatpush1.msra.mxu0 0.0
        %591 = vmatprep.subr.mxu0 0.0
        %592 = vmatpush1.msra.mxu0 0.0
        %593 = vmatprep.subr.mxu0 0.0
        %594 = vmatpush1.msra.mxu0 0.0
        %595 = vmatprep.subr.mxu0 0.0
        %596 = vmatpush1.msra.mxu0 0.0
        %597 = vmatprep.mubr.f32.mxu0 0.0
        %598 = vmatmul.mubr.f32.gmra.mrb[0].mxu0 %v389
        %v599 = vpop.f32.mrb[0].mxu0
        %v600 = vadd.f32 0.0, %v599
        %v601 = vpop.f32.mrb[0].mxu0
        %602 = vdwg.mxu0
        %v603 = vld [vmem:[%s343] sm:$0xff]
        %v604 = vld [vmem:[%s343 + $0x8] sm:$0xff]
        %v606 = vsel %vm387, %v603, 0
        %v609 = vsel %vm387, %v604, 0
        %611 = vmatprep.subr.mxu0 %v347
        %612 = vmatpush1.msra.mxu0 %v346
        %613 = vmatprep.subr.mxu0 %v352
        %614 = vmatpush1.msra.mxu0 %v351
        %615 = vmatprep.subr.mxu0 %v357
        %616 = vmatpush1.msra.mxu0 %v356
        %617 = vmatprep.subr.mxu0 %v362
        %618 = vmatpush1.msra.mxu0 %v361
        %619 = vmatprep.subr.mxu0 %v367
        %620 = vmatpush1.msra.mxu0 %v366
        %621 = vmatprep.subr.mxu0 %v372
        %622 = vmatpush1.msra.mxu0 %v371
        %623 = vmatprep.subr.mxu0 %v377
        %624 = vmatpush1.msra.mxu0 %v376
        %625 = vmatprep.subr.mxu0 %v382
        %626 = vmatpush1.msra.mxu0 %v381
        %627 = vmatprep.subr.mxu0 0.0
        %628 = vmatpush1.msra.mxu0 0.0
        %629 = vmatprep.subr.mxu0 0.0
        %630 = vmatpush1.msra.mxu0 0.0
        %631 = vmatprep.subr.mxu0 0.0
        %632 = vmatpush1.msra.mxu0 0.0
        %633 = vmatprep.subr.mxu0 0.0
        %634 = vmatpush1.msra.mxu0 0.0
        %635 = vmatprep.subr.mxu0 0.0
        %636 = vmatpush1.msra.mxu0 0.0
        %637 = vmatprep.subr.mxu0 0.0
        %638 = vmatpush1.msra.mxu0 0.0
        %639 = vmatprep.subr.mxu0 0.0
        %640 = vmatpush1.msra.mxu0 0.0
        %641 = vmatprep.subr.mxu0 0.0
        %642 = vmatpush1.msra.mxu0 0.0
        %643 = vmatprep.subr.mxu0 0.0
        %644 = vmatpush1.msra.mxu0 0.0
        %645 = vmatprep.subr.mxu0 0.0
        %646 = vmatpush1.msra.mxu0 0.0
        %647 = vmatprep.subr.mxu0 0.0
        %648 = vmatpush1.msra.mxu0 0.0
        %649 = vmatprep.subr.mxu0 0.0
        %650 = vmatpush1.msra.mxu0 0.0
        %651 = vmatprep.subr.mxu0 0.0
        %652 = vmatpush1.msra.mxu0 0.0
        %653 = vmatprep.subr.mxu0 0.0
        %654 = vmatpush1.msra.mxu0 0.0
        %655 = vmatprep.subr.mxu0 0.0
        %656 = vmatpush1.msra.mxu0 0.0
        %657 = vmatprep.subr.mxu0 0.0
        %658 = vmatpush1.msra.mxu0 0.0
        %659 = vmatprep.subr.mxu0 0.0
        %660 = vmatpush1.msra.mxu0 0.0
        %661 = vmatprep.subr.mxu0 0.0
        %662 = vmatpush1.msra.mxu0 0.0
        %663 = vmatprep.subr.mxu0 0.0
        %664 = vmatpush1.msra.mxu0 0.0
        %665 = vmatprep.subr.mxu0 0.0
        %666 = vmatpush1.msra.mxu0 0.0
        %667 = vmatprep.subr.mxu0 0.0
        %668 = vmatpush1.msra.mxu0 0.0
        %669 = vmatprep.subr.mxu0 0.0
        %670 = vmatpush1.msra.mxu0 0.0
        %671 = vmatprep.subr.mxu0 0.0
        %672 = vmatpush1.msra.mxu0 0.0
        %673 = vmatprep.subr.mxu0 0.0
        %674 = vmatpush1.msra.mxu0 0.0
        %675 = vmatprep.mubr.f32.mxu0 0.0
        %676 = vmatmul.mubr.f32.gmra.mrb[0].mxu0 %v606
        %v677 = vpop.f32.mrb[0].mxu0
        %v678 = vadd.f32 0.0, %v677
        %v679 = vpop.f32.mrb[0].mxu0
        %v680 = vadd.f32 0.0, %v679
        %681 = vmatprep.mubr.f32.mxu0 0.0
        %682 = vmatmul.mubr.f32.gmra.mrb[0].mxu0 %v609
        %v683 = vpop.f32.mrb[0].mxu0
        %v684 = vadd.f32 0.0, %v683
        %v685 = vpop.f32.mrb[0].mxu0
        %v686 = vadd.f32 0.0, %v685
        %687 = vdwg.mxu0
        %688 = vmatprep.subr.mxu0 %v349
        %689 = vmatpush1.msra.mxu0 %v348
        %690 = vmatprep.subr.mxu0 %v354
        %691 = vmatpush1.msra.mxu0 %v353
        %692 = vmatprep.subr.mxu0 %v359
        %693 = vmatpush1.msra.mxu0 %v358
        %694 = vmatprep.subr.mxu0 %v364
        %695 = vmatpush1.msra.mxu0 %v363
        %696 = vmatprep.subr.mxu0 %v369
        %697 = vmatpush1.msra.mxu0 %v368
        %698 = vmatprep.subr.mxu0 %v374
        %699 = vmatpush1.msra.mxu0 %v373
        %700 = vmatprep.subr.mxu0 %v379
        %701 = vmatpush1.msra.mxu0 %v378
        %702 = vmatprep.subr.mxu0 %v384
        %703 = vmatpush1.msra.mxu0 %v383
        %704 = vmatprep.subr.mxu0 0.0
        %705 = vmatpush1.msra.mxu0 0.0
        %706 = vmatprep.subr.mxu0 0.0
        %707 = vmatpush1.msra.mxu0 0.0
        %708 = vmatprep.subr.mxu0 0.0
        %709 = vmatpush1.msra.mxu0 0.0
        %710 = vmatprep.subr.mxu0 0.0
        %711 = vmatpush1.msra.mxu0 0.0
        %712 = vmatprep.subr.mxu0 0.0
        %713 = vmatpush1.msra.mxu0 0.0
        %714 = vmatprep.subr.mxu0 0.0
        %715 = vmatpush1.msra.mxu0 0.0
        %716 = vmatprep.subr.mxu0 0.0
        %717 = vmatpush1.msra.mxu0 0.0
        %718 = vmatprep.subr.mxu0 0.0
        %719 = vmatpush1.msra.mxu0 0.0
        %720 = vmatprep.subr.mxu0 0.0
        %721 = vmatpush1.msra.mxu0 0.0
        %722 = vmatprep.subr.mxu0 0.0
        %723 = vmatpush1.msra.mxu0 0.0
        %724 = vmatprep.subr.mxu0 0.0
        %725 = vmatpush1.msra.mxu0 0.0
        %726 = vmatprep.subr.mxu0 0.0
        %727 = vmatpush1.msra.mxu0 0.0
        %728 = vmatprep.subr.mxu0 0.0
        %729 = vmatpush1.msra.mxu0 0.0
        %730 = vmatprep.subr.mxu0 0.0
        %731 = vmatpush1.msra.mxu0 0.0
        %732 = vmatprep.subr.mxu0 0.0
        %733 = vmatpush1.msra.mxu0 0.0
        %734 = vmatprep.subr.mxu0 0.0
        %735 = vmatpush1.msra.mxu0 0.0
        %736 = vmatprep.subr.mxu0 0.0
        %737 = vmatpush1.msra.mxu0 0.0
        %738 = vmatprep.subr.mxu0 0.0
        %739 = vmatpush1.msra.mxu0 0.0
        %740 = vmatprep.subr.mxu0 0.0
        %741 = vmatpush1.msra.mxu0 0.0
        %742 = vmatprep.subr.mxu0 0.0
        %743 = vmatpush1.msra.mxu0 0.0
        %744 = vmatprep.subr.mxu0 0.0
        %745 = vmatpush1.msra.mxu0 0.0
        %746 = vmatprep.subr.mxu0 0.0
        %747 = vmatpush1.msra.mxu0 0.0
        %748 = vmatprep.subr.mxu0 0.0
        %749 = vmatpush1.msra.mxu0 0.0
        %750 = vmatprep.subr.mxu0 0.0
        %751 = vmatpush1.msra.mxu0 0.0
        %752 = vmatprep.mubr.f32.mxu0 0.0
        %753 = vmatmul.mubr.f32.gmra.mrb[0].mxu0 %v606
        %v754 = vpop.f32.mrb[0].mxu0
        %v755 = vadd.f32 0.0, %v754
        %v756 = vpop.f32.mrb[0].mxu0
        %v757 = vadd.f32 0.0, %v756
        %758 = vmatprep.mubr.f32.mxu0 0.0
        %759 = vmatmul.mubr.f32.gmra.mrb[0].mxu0 %v609
        %v760 = vpop.f32.mrb[0].mxu0
        %v761 = vadd.f32 0.0, %v760
        %v762 = vpop.f32.mrb[0].mxu0
        %v763 = vadd.f32 0.0, %v762
        %764 = vdwg.mxu0
        %765 = vmatprep.subr.mxu0 0.0
        %766 = vmatpush1.msra.mxu0 %v350
        %767 = vmatprep.subr.mxu0 0.0
        %768 = vmatpush1.msra.mxu0 %v355
        %769 = vmatprep.subr.mxu0 0.0
        %770 = vmatpush1.msra.mxu0 %v360
        %771 = vmatprep.subr.mxu0 0.0
        %772 = vmatpush1.msra.mxu0 %v365
        %773 = vmatprep.subr.mxu0 0.0
        %774 = vmatpush1.msra.mxu0 %v370
        %775 = vmatprep.subr.mxu0 0.0
        %776 = vmatpush1.msra.mxu0 %v375
        %777 = vmatprep.subr.mxu0 0.0
        %778 = vmatpush1.msra.mxu0 %v380
        %779 = vmatprep.subr.mxu0 0.0
        %780 = vmatpush1.msra.mxu0 %v385
        %781 = vmatprep.subr.mxu0 0.0
        %782 = vmatpush1.msra.mxu0 0.0
        %783 = vmatprep.subr.mxu0 0.0
        %784 = vmatpush1.msra.mxu0 0.0
        %785 = vmatprep.subr.mxu0 0.0
        %786 = vmatpush1.msra.mxu0 0.0
        %787 = vmatprep.subr.mxu0 0.0
        %788 = vmatpush1.msra.mxu0 0.0
        %789 = vmatprep.subr.mxu0 0.0
        %790 = vmatpush1.msra.mxu0 0.0
        %791 = vmatprep.subr.mxu0 0.0
        %792 = vmatpush1.msra.mxu0 0.0
        %793 = vmatprep.subr.mxu0 0.0
        %794 = vmatpush1.msra.mxu0 0.0
        %795 = vmatprep.subr.mxu0 0.0
        %796 = vmatpush1.msra.mxu0 0.0
        %797 = vmatprep.subr.mxu0 0.0
        %798 = vmatpush1.msra.mxu0 0.0
        %799 = vmatprep.subr.mxu0 0.0
        %800 = vmatpush1.msra.mxu0 0.0
        %801 = vmatprep.subr.mxu0 0.0
        %802 = vmatpush1.msra.mxu0 0.0
        %803 = vmatprep.subr.mxu0 0.0
        %804 = vmatpush1.msra.mxu0 0.0
        %805 = vmatprep.subr.mxu0 0.0
        %806 = vmatpush1.msra.mxu0 0.0
        %807 = vmatprep.subr.mxu0 0.0
        %808 = vmatpush1.msra.mxu0 0.0
        %809 = vmatprep.subr.mxu0 0.0
        %810 = vmatpush1.msra.mxu0 0.0
        %811 = vmatprep.subr.mxu0 0.0
        %812 = vmatpush1.msra.mxu0 0.0
        %813 = vmatprep.subr.mxu0 0.0
        %814 = vmatpush1.msra.mxu0 0.0
        %815 = vmatprep.subr.mxu0 0.0
        %816 = vmatpush1.msra.mxu0 0.0
        %817 = vmatprep.subr.mxu0 0.0
        %818 = vmatpush1.msra.mxu0 0.0
        %819 = vmatprep.subr.mxu0 0.0
        %820 = vmatpush1.msra.mxu0 0.0
        %821 = vmatprep.subr.mxu0 0.0
        %822 = vmatpush1.msra.mxu0 0.0
        %823 = vmatprep.subr.mxu0 0.0
        %824 = vmatpush1.msra.mxu0 0.0
        %825 = vmatprep.subr.mxu0 0.0
        %826 = vmatpush1.msra.mxu0 0.0
        %827 = vmatprep.subr.mxu0 0.0
        %828 = vmatpush1.msra.mxu0 0.0
        %829 = vmatprep.mubr.f32.mxu0 0.0
        %830 = vmatmul.mubr.f32.gmra.mrb[0].mxu0 %v606
        %v831 = vpop.f32.mrb[0].mxu0
        %v832 = vadd.f32 0.0, %v831
        %v833 = vpop.f32.mrb[0].mxu0
        %834 = vmatprep.mubr.f32.mxu0 0.0
        %835 = vmatmul.mubr.f32.gmra.mrb[0].mxu0 %v609
        %v836 = vpop.f32.mrb[0].mxu0
        %v837 = vadd.f32 0.0, %v836
        %v838 = vpop.f32.mrb[0].mxu0
        %839 = vdwg.mxu0
        %840 = vst.msk [vmem:[#allocation2] sm:$0xff] %vm387, %v458
        %841 = vst.msk [vmem:[#allocation2 + $0x48] sm:$0xff] %vm387, %v678
        %842 = vst.msk [vmem:[#allocation2 + $0x50] sm:$0xff] %vm387, %v684
        %844 = vrot.lane.b32.xlu0 %v458, 64
        %v845 = vpop.permute.xlu0 %844
        %847 = vst.msk [vmem:[#allocation2 + $0x8] sm:$0xff] %vm387, %v845
        %850 = vrot.lane.b32.xlu0 %v678, 64
        %v851 = vpop.permute.xlu0 %850
        %852 = vrot.lane.b32.xlu0 %v684, 64
        %v853 = vpop.permute.xlu0 %852
        %856 = vst.msk [vmem:[#allocation2 + $0x58] sm:$0xff] %vm387, %v851
        %857 = vst.msk [vmem:[#allocation2 + $0x60] sm:$0xff] %vm387, %v853
        %858 = vst.msk [vmem:[#allocation2 + $0x10] sm:$0xff] %vm387, %v460
        %859 = vst.msk [vmem:[#allocation2 + $0x68] sm:$0xff] %vm387, %v680
        %860 = vst.msk [vmem:[#allocation2 + $0x70] sm:$0xff] %vm387, %v686
        %862 = vrot.lane.b32.xlu0 %v460, 64
        %v863 = vpop.permute.xlu0 %862
        %865 = vst.msk [vmem:[#allocation2 + $0x18] sm:$0xff] %vm387, %v863
        %868 = vrot.lane.b32.xlu0 %v680, 64
        %v869 = vpop.permute.xlu0 %868
        %870 = vrot.lane.b32.xlu0 %v686, 64
        %v871 = vpop.permute.xlu0 %870
        %874 = vst.msk [vmem:[#allocation2 + $0x78] sm:$0xff] %vm387, %v869
        %875 = vst.msk [vmem:[#allocation2 + $0x80] sm:$0xff] %vm387, %v871
        %876 = vst.msk [vmem:[#allocation2 + $0x20] sm:$0xff] %vm387, %v529
        %877 = vst.msk [vmem:[#allocation2 + $0x88] sm:$0xff] %vm387, %v755
        %878 = vst.msk [vmem:[#allocation2 + $0x90] sm:$0xff] %vm387, %v761
        %880 = vrot.lane.b32.xlu0 %v529, 64
        %v881 = vpop.permute.xlu0 %880
        %883 = vst.msk [vmem:[#allocation2 + $0x28] sm:$0xff] %vm387, %v881
        %886 = vrot.lane.b32.xlu0 %v755, 64
        %v887 = vpop.permute.xlu0 %886
        %888 = vrot.lane.b32.xlu0 %v761, 64
        %v889 = vpop.permute.xlu0 %888
        %892 = vst.msk [vmem:[#allocation2 + $0x98] sm:$0xff] %vm387, %v887
        %893 = vst.msk [vmem:[#allocation2 + $0xa0] sm:$0xff] %vm387, %v889
        %894 = vst.msk [vmem:[#allocation2 + $0x30] sm:$0xff] %vm387, %v531
        %895 = vst.msk [vmem:[#allocation2 + $0xa8] sm:$0xff] %vm387, %v757
        %896 = vst.msk [vmem:[#allocation2 + $0xb0] sm:$0xff] %vm387, %v763
        %898 = vrot.lane.b32.xlu0 %v531, 64
        %v899 = vpop.permute.xlu0 %898
        %901 = vst.msk [vmem:[#allocation2 + $0x38] sm:$0xff] %vm387, %v899
        %904 = vrot.lane.b32.xlu0 %v757, 64
        %v905 = vpop.permute.xlu0 %904
        %906 = vrot.lane.b32.xlu0 %v763, 64
        %v907 = vpop.permute.xlu0 %906
        %910 = vst.msk [vmem:[#allocation2 + $0xb8] sm:$0xff] %vm387, %v905
        %911 = vst.msk [vmem:[#allocation2 + $0xc0] sm:$0xff] %vm387, %v907
        %912 = vst.msk [vmem:[#allocation2 + $0x40] sm:$0xff] %vm387, %v600
        %913 = vst.msk [vmem:[#allocation2 + $0xc8] sm:$0xff] %vm387, %v832
        %914 = vst.msk [vmem:[#allocation2 + $0xd0] sm:$0xff] %vm387, %v837
        %v915 = vld [vmem:[#allocation9] sm:$0xff]
        %v916 = vld [vmem:[#allocation9 + $0x8] sm:$0xff]
        %v917 = vld [vmem:[#allocation9 + $0x10] sm:$0xff]
        %v918 = vld [vmem:[#allocation9 + $0x18] sm:$0xff]
        %v919 = vld [vmem:[#allocation9 + $0x20] sm:$0xff]
        %v920 = vld [vmem:[#allocation9 + $0x28] sm:$0xff]
        %v921 = vld [vmem:[#allocation9 + $0x30] sm:$0xff]
        %v922 = vld [vmem:[#allocation9 + $0x38] sm:$0xff]
        %v923 = vld [vmem:[#allocation9 + $0x40] sm:$0xff]
        %v924 = vld [vmem:[#allocation9 + $0x48] sm:$0xff]
        %v925 = vld [vmem:[#allocation9 + $0x50] sm:$0xff]
        %v926 = vld [vmem:[#allocation9 + $0x58] sm:$0xff]
        %v927 = vld [vmem:[#allocation2] sm:$0xff]
        %v928 = vld [vmem:[#allocation2 + $0x8] sm:$0xff]
        %v929 = vld [vmem:[#allocation2 + $0x10] sm:$0xff]
        %v930 = vld [vmem:[#allocation2 + $0x18] sm:$0xff]
        %v931 = vld [vmem:[#allocation2 + $0x20] sm:$0xff]
        %v932 = vld [vmem:[#allocation2 + $0x28] sm:$0xff]
        %v933 = vld [vmem:[#allocation2 + $0x30] sm:$0xff]
        %v934 = vld [vmem:[#allocation2 + $0x38] sm:$0xff]
        %v935 = vld [vmem:[#allocation2 + $0x40] sm:$0xff]
        %v936 = vld [vmem:[#allocation2 + $0x48] sm:$0xff]
        %v937 = vld [vmem:[#allocation2 + $0x50] sm:$0xff]
        %v938 = vld [vmem:[#allocation2 + $0x58] sm:$0xff]
        %v939 = vld [vmem:[#allocation2 + $0x60] sm:$0xff]
        %v940 = vld [vmem:[#allocation2 + $0x68] sm:$0xff]
        %v941 = vld [vmem:[#allocation2 + $0x70] sm:$0xff]
        %v942 = vld [vmem:[#allocation2 + $0x78] sm:$0xff]
        %v943 = vld [vmem:[#allocation2 + $0x80] sm:$0xff]
        %v944 = vld [vmem:[#allocation2 + $0x88] sm:$0xff]
        %v945 = vld [vmem:[#allocation2 + $0x90] sm:$0xff]
        %v946 = vld [vmem:[#allocation2 + $0x98] sm:$0xff]
        %v947 = vld [vmem:[#allocation2 + $0xa0] sm:$0xff]
        %v948 = vld [vmem:[#allocation2 + $0xa8] sm:$0xff]
        %v949 = vld [vmem:[#allocation2 + $0xb0] sm:$0xff]
        %v950 = vld [vmem:[#allocation2 + $0xb8] sm:$0xff]
        %v951 = vld [vmem:[#allocation2 + $0xc0] sm:$0xff]
        %v952 = vld [vmem:[#allocation2 + $0xc8] sm:$0xff]
        %v953 = vld [vmem:[#allocation2 + $0xd0] sm:$0xff]
        %vm954 = vcmask 719872
        %v956 = vsel %vm954, %v916, 0
        %v959 = vsel %vm954, %v918, 0
        %v962 = vsel %vm954, %v920, 0
        %v965 = vsel %vm954, %v922, 0
        %v968 = vsel %vm954, %v924, 0
        %v971 = vsel %vm954, %v926, 0
        %973 = vmatprep.subr.mxu0 0.0
        %974 = vmatpush1.msra.mxu0 %v927
        %975 = vmatprep.subr.mxu0 0.0
        %976 = vmatpush1.msra.mxu0 %v928
        %977 = vmatprep.subr.mxu0 0.0
        %978 = vmatpush1.msra.mxu0 %v929
        %979 = vmatprep.subr.mxu0 0.0
        %980 = vmatpush1.msra.mxu0 %v930
        %981 = vmatprep.subr.mxu0 0.0
        %982 = vmatpush1.msra.mxu0 %v931
        %983 = vmatprep.subr.mxu0 0.0
        %984 = vmatpush1.msra.mxu0 %v932
        %985 = vmatprep.subr.mxu0 0.0
        %986 = vmatpush1.msra.mxu0 %v933
        %987 = vmatprep.subr.mxu0 0.0
        %988 = vmatpush1.msra.mxu0 %v934
        %989 = vmatprep.subr.mxu0 0.0
        %990 = vmatpush1.msra.mxu0 %v935
        %991 = vmatprep.subr.mxu0 0.0
        %992 = vmatpush1.msra.mxu0 %v936
        %993 = vmatprep.subr.mxu0 0.0
        %994 = vmatpush1.msra.mxu0 %v937
        %995 = vmatprep.subr.mxu0 0.0
        %996 = vmatpush1.msra.mxu0 %v938
        %997 = vmatprep.subr.mxu0 0.0
        %998 = vmatpush1.msra.mxu0 %v939
        %999 = vmatprep.subr.mxu0 0.0
        %1000 = vmatpush1.msra.mxu0 %v940
        %1001 = vmatprep.subr.mxu0 0.0
        %1002 = vmatpush1.msra.mxu0 %v941
        %1003 = vmatprep.subr.mxu0 0.0
        %1004 = vmatpush1.msra.mxu0 %v942
        %1005 = vmatprep.subr.mxu0 0.0
        %1006 = vmatpush1.msra.mxu0 %v943
        %1007 = vmatprep.subr.mxu0 0.0
        %1008 = vmatpush1.msra.mxu0 %v944
        %1009 = vmatprep.subr.mxu0 0.0
        %1010 = vmatpush1.msra.mxu0 %v945
        %1011 = vmatprep.subr.mxu0 0.0
        %1012 = vmatpush1.msra.mxu0 %v946
        %1013 = vmatprep.subr.mxu0 0.0
        %1014 = vmatpush1.msra.mxu0 %v947
        %1015 = vmatprep.subr.mxu0 0.0
        %1016 = vmatpush1.msra.mxu0 %v948
        %1017 = vmatprep.subr.mxu0 0.0
        %1018 = vmatpush1.msra.mxu0 %v949
        %1019 = vmatprep.subr.mxu0 0.0
        %1020 = vmatpush1.msra.mxu0 %v950
        %1021 = vmatprep.subr.mxu0 0.0
        %1022 = vmatpush1.msra.mxu0 %v951
        %1023 = vmatprep.subr.mxu0 0.0
        %1024 = vmatpush1.msra.mxu0 %v952
        %1025 = vmatprep.subr.mxu0 0.0
        %1026 = vmatpush1.msra.mxu0 %v953
        %1027 = vmatprep.subr.mxu0 0.0
        %1028 = vmatpush1.msra.mxu0 0.0
        %1029 = vmatprep.subr.mxu0 0.0
        %1030 = vmatpush1.msra.mxu0 0.0
        %1031 = vmatprep.subr.mxu0 0.0
        %1032 = vmatpush1.msra.mxu0 0.0
        %1033 = vmatprep.subr.mxu0 0.0
        %1034 = vmatpush1.msra.mxu0 0.0
        %1035 = vmatprep.subr.mxu0 0.0
        %1036 = vmatpush1.msra.mxu0 0.0
        %1037 = vmatprep.mubr.f32.mxu0 %v956
        %1038 = vmatmul.mubr.f32.gmra.mrb[0].mxu0 %v915
        %v1039 = vpop.f32.mrb[0].mxu0
        %v1040 = vadd.f32 0.0, %v1039
        %v1041 = vpop.f32.mrb[0].mxu0
        %1042 = vmatprep.mubr.f32.mxu0 %v959
        %1043 = vmatmul.mubr.f32.gmra.mrb[0].mxu0 %v917
        %v1044 = vpop.f32.mrb[0].mxu0
        %v1045 = vadd.f32 0.0, %v1044
        %v1046 = vpop.f32.mrb[0].mxu0
        %1047 = vmatprep.mubr.f32.mxu0 %v962
        %1048 = vmatmul.mubr.f32.gmra.mrb[0].mxu0 %v919
        %v1049 = vpop.f32.mrb[0].mxu0
        %v1050 = vadd.f32 0.0, %v1049
        %v1051 = vpop.f32.mrb[0].mxu0
        %1052 = vmatprep.mubr.f32.mxu0 %v965
        %1053 = vmatmul.mubr.f32.gmra.mrb[0].mxu0 %v921
        %v1054 = vpop.f32.mrb[0].mxu0
        %v1055 = vadd.f32 0.0, %v1054
        %v1056 = vpop.f32.mrb[0].mxu0
        %1057 = vmatprep.mubr.f32.mxu0 %v968
        %1058 = vmatmul.mubr.f32.gmra.mrb[0].mxu0 %v923
        %v1059 = vpop.f32.mrb[0].mxu0
        %v1060 = vadd.f32 0.0, %v1059
        %v1061 = vpop.f32.mrb[0].mxu0
        %1062 = vmatprep.mubr.f32.mxu0 %v971
        %1063 = vmatmul.mubr.f32.gmra.mrb[0].mxu0 %v925
        %v1064 = vpop.f32.mrb[0].mxu0
        %v1065 = vadd.f32 0.0, %v1064
        %v1066 = vpop.f32.mrb[0].mxu0
        %1067 = vdwg.mxu0
        %v1068 = vld [vmem:[%s5] sm:$0xff]
        %v1069 = vld [vmem:[%s5 + $0x8] sm:$0xff]
        %1071 = vset.pattern.permute.xlu0 0
        %1072 = vperm.xlu0 %1071, %v1068
        %v1073 = vpop.permute.xlu0 %1072
        %1076 = vset.pattern.permute.xlu0 0
        %1077 = vperm.xlu0 %1076, %v1069
        %v1078 = vpop.permute.xlu0 %1077
        %v1080 = vadd.f32 %v1040, %v1073
        %v1081 = vadd.f32 %v1045, %v1078
        %v1082 = vxor.u32 %v1080, 2147483648
        %v1083 = vxor.u32 %v1081, 2147483648
        %v1084 = vmul.f32 %v1082, 1.442695
        %v1085 = vpow.pop %v1084
        %v1086 = vmul.f32 %v1083, 1.442695
        %v1087 = vpow.pop %v1086
        %v1088 = vadd.f32 %v1085, 1.0
        %v1089 = vadd.f32 %v1087, 1.0
        %v1090 = vrcp.pop %v1088
        %v1091 = vmul.f32 1.0, %v1090
        %v1092 = vrcp.pop %v1089
        %v1093 = vmul.f32 1.0, %v1092
        %v1094 = vld [vmem:[%s5 + $0x10] sm:$0xff]
        %v1095 = vld [vmem:[%s5 + $0x18] sm:$0xff]
        %1097 = vset.pattern.permute.xlu0 0
        %1098 = vperm.xlu0 %1097, %v1094
        %v1099 = vpop.permute.xlu0 %1098
        %1102 = vset.pattern.permute.xlu0 0
        %1103 = vperm.xlu0 %1102, %v1095
        %v1104 = vpop.permute.xlu0 %1103
        %v1106 = vadd.f32 %v1050, %v1099
        %v1107 = vadd.f32 %v1055, %v1104
        %v1108 = vxor.u32 %v1106, 2147483648
        %v1109 = vxor.u32 %v1107, 2147483648
        %v1110 = vmul.f32 %v1108, 1.442695
        %v1111 = vpow.pop %v1110
        %v1112 = vmul.f32 %v1109, 1.442695
        %v1113 = vpow.pop %v1112
        %v1114 = vadd.f32 %v1111, 1.0
        %v1115 = vadd.f32 %v1113, 1.0
        %v1116 = vrcp.pop %v1114
        %v1117 = vmul.f32 1.0, %v1116
        %v1118 = vrcp.pop %v1115
        %v1119 = vmul.f32 1.0, %v1118
        %v1120 = vld [vmem:[%s343] sm:$0xff]
        %v1121 = vld [vmem:[%s343 + $0x8] sm:$0xff]
        %v1122 = vmul.f32 %v1117, %v1120
        %v1123 = vmul.f32 %v1119, %v1121
        %1124 = vst.msk [vmem:[#allocation3] sm:$0xff] %vm387, %v1122
        %1125 = vst.msk [vmem:[#allocation3 + $0x8] sm:$0xff] %vm387, %v1123
        %v1126 = vld [vmem:[#allocation3] sm:$0xff]
        %v1127 = vld [vmem:[#allocation3 + $0x8] sm:$0xff]
        %v1129 = vsel %vm387, %v1126, 0
        %v1132 = vsel %vm387, %v1127, 0
        %1134 = vmatprep.subr.mxu0 %v347
        %1135 = vmatpush1.msra.mxu0 %v346
        %1136 = vmatprep.subr.mxu0 %v352
        %1137 = vmatpush1.msra.mxu0 %v351
        %1138 = vmatprep.subr.mxu0 %v357
        %1139 = vmatpush1.msra.mxu0 %v356
        %1140 = vmatprep.subr.mxu0 %v362
        %1141 = vmatpush1.msra.mxu0 %v361
        %1142 = vmatprep.subr.mxu0 %v367
        %1143 = vmatpush1.msra.mxu0 %v366
        %1144 = vmatprep.subr.mxu0 %v372
        %1145 = vmatpush1.msra.mxu0 %v371
        %1146 = vmatprep.subr.mxu0 %v377
        %1147 = vmatpush1.msra.mxu0 %v376
        %1148 = vmatprep.subr.mxu0 %v382
        %1149 = vmatpush1.msra.mxu0 %v381
        %1150 = vmatprep.subr.mxu0 0.0
        %1151 = vmatpush1.msra.mxu0 0.0
        %1152 = vmatprep.subr.mxu0 0.0
        %1153 = vmatpush1.msra.mxu0 0.0
        %1154 = vmatprep.subr.mxu0 0.0
        %1155 = vmatpush1.msra.mxu0 0.0
        %1156 = vmatprep.subr.mxu0 0.0
        %1157 = vmatpush1.msra.mxu0 0.0
        %1158 = vmatprep.subr.mxu0 0.0
        %1159 = vmatpush1.msra.mxu0 0.0
        %1160 = vmatprep.subr.mxu0 0.0
        %1161 = vmatpush1.msra.mxu0 0.0
        %1162 = vmatprep.subr.mxu0 0.0
        %1163 = vmatpush1.msra.mxu0 0.0
        %1164 = vmatprep.subr.mxu0 0.0
        %1165 = vmatpush1.msra.mxu0 0.0
        %1166 = vmatprep.subr.mxu0 0.0
        %1167 = vmatpush1.msra.mxu0 0.0
        %1168 = vmatprep.subr.mxu0 0.0
        %1169 = vmatpush1.msra.mxu0 0.0
        %1170 = vmatprep.subr.mxu0 0.0
        %1171 = vmatpush1.msra.mxu0 0.0
        %1172 = vmatprep.subr.mxu0 0.0
        %1173 = vmatpush1.msra.mxu0 0.0
        %1174 = vmatprep.subr.mxu0 0.0
        %1175 = vmatpush1.msra.mxu0 0.0
        %1176 = vmatprep.subr.mxu0 0.0
        %1177 = vmatpush1.msra.mxu0 0.0
        %1178 = vmatprep.subr.mxu0 0.0
        %1179 = vmatpush1.msra.mxu0 0.0
        %1180 = vmatprep.subr.mxu0 0.0
        %1181 = vmatpush1.msra.mxu0 0.0
        %1182 = vmatprep.subr.mxu0 0.0
        %1183 = vmatpush1.msra.mxu0 0.0
        %1184 = vmatprep.subr.mxu0 0.0
        %1185 = vmatpush1.msra.mxu0 0.0
        %1186 = vmatprep.subr.mxu0 0.0
        %1187 = vmatpush1.msra.mxu0 0.0
        %1188 = vmatprep.subr.mxu0 0.0
        %1189 = vmatpush1.msra.mxu0 0.0
        %1190 = vmatprep.subr.mxu0 0.0
        %1191 = vmatpush1.msra.mxu0 0.0
        %1192 = vmatprep.subr.mxu0 0.0
        %1193 = vmatpush1.msra.mxu0 0.0
        %1194 = vmatprep.subr.mxu0 0.0
        %1195 = vmatpush1.msra.mxu0 0.0
        %1196 = vmatprep.subr.mxu0 0.0
        %1197 = vmatpush1.msra.mxu0 0.0
        %1198 = vmatprep.mubr.f32.mxu0 0.0
        %1199 = vmatmul.mubr.f32.gmra.mrb[0].mxu0 %v1129
        %v1200 = vpop.f32.mrb[0].mxu0
        %v1201 = vadd.f32 0.0, %v1200
        %v1202 = vpop.f32.mrb[0].mxu0
        %v1203 = vadd.f32 0.0, %v1202
        %1204 = vmatprep.mubr.f32.mxu0 0.0
        %1205 = vmatmul.mubr.f32.gmra.mrb[0].mxu0 %v1132
        %v1206 = vpop.f32.mrb[0].mxu0
        %v1207 = vadd.f32 0.0, %v1206
        %v1208 = vpop.f32.mrb[0].mxu0
        %v1209 = vadd.f32 0.0, %v1208
        %1210 = vdwg.mxu0
        %1211 = vmatprep.subr.mxu0 %v349
        %1212 = vmatpush1.msra.mxu0 %v348
        %1213 = vmatprep.subr.mxu0 %v354
        %1214 = vmatpush1.msra.mxu0 %v353
        %1215 = vmatprep.subr.mxu0 %v359
        %1216 = vmatpush1.msra.mxu0 %v358
        %1217 = vmatprep.subr.mxu0 %v364
        %1218 = vmatpush1.msra.mxu0 %v363
        %1219 = vmatprep.subr.mxu0 %v369
        %1220 = vmatpush1.msra.mxu0 %v368
        %1221 = vmatprep.subr.mxu0 %v374
        %1222 = vmatpush1.msra.mxu0 %v373
        %1223 = vmatprep.subr.mxu0 %v379
        %1224 = vmatpush1.msra.mxu0 %v378
        %1225 = vmatprep.subr.mxu0 %v384
        %1226 = vmatpush1.msra.mxu0 %v383
        %1227 = vmatprep.subr.mxu0 0.0
        %1228 = vmatpush1.msra.mxu0 0.0
        %1229 = vmatprep.subr.mxu0 0.0
        %1230 = vmatpush1.msra.mxu0 0.0
        %1231 = vmatprep.subr.mxu0 0.0
        %1232 = vmatpush1.msra.mxu0 0.0
        %1233 = vmatprep.subr.mxu0 0.0
        %1234 = vmatpush1.msra.mxu0 0.0
        %1235 = vmatprep.subr.mxu0 0.0
        %1236 = vmatpush1.msra.mxu0 0.0
        %1237 = vmatprep.subr.mxu0 0.0
        %1238 = vmatpush1.msra.mxu0 0.0
        %1239 = vmatprep.subr.mxu0 0.0
        %1240 = vmatpush1.msra.mxu0 0.0
        %1241 = vmatprep.subr.mxu0 0.0
        %1242 = vmatpush1.msra.mxu0 0.0
        %1243 = vmatprep.subr.mxu0 0.0
        %1244 = vmatpush1.msra.mxu0 0.0
        %1245 = vmatprep.subr.mxu0 0.0
        %1246 = vmatpush1.msra.mxu0 0.0
        %1247 = vmatprep.subr.mxu0 0.0
        %1248 = vmatpush1.msra.mxu0 0.0
        %1249 = vmatprep.subr.mxu0 0.0
        %1250 = vmatpush1.msra.mxu0 0.0
        %1251 = vmatprep.subr.mxu0 0.0
        %1252 = vmatpush1.msra.mxu0 0.0
        %1253 = vmatprep.subr.mxu0 0.0
        %1254 = vmatpush1.msra.mxu0 0.0
        %1255 = vmatprep.subr.mxu0 0.0
        %1256 = vmatpush1.msra.mxu0 0.0
        %1257 = vmatprep.subr.mxu0 0.0
        %1258 = vmatpush1.msra.mxu0 0.0
        %1259 = vmatprep.subr.mxu0 0.0
        %1260 = vmatpush1.msra.mxu0 0.0
        %1261 = vmatprep.subr.mxu0 0.0
        %1262 = vmatpush1.msra.mxu0 0.0
        %1263 = vmatprep.subr.mxu0 0.0
        %1264 = vmatpush1.msra.mxu0 0.0
        %1265 = vmatprep.subr.mxu0 0.0
        %1266 = vmatpush1.msra.mxu0 0.0
        %1267 = vmatprep.subr.mxu0 0.0
        %1268 = vmatpush1.msra.mxu0 0.0
        %1269 = vmatprep.subr.mxu0 0.0
        %1270 = vmatpush1.msra.mxu0 0.0
        %1271 = vmatprep.subr.mxu0 0.0
        %1272 = vmatpush1.msra.mxu0 0.0
        %1273 = vmatprep.subr.mxu0 0.0
        %1274 = vmatpush1.msra.mxu0 0.0
        %1275 = vmatprep.mubr.f32.mxu0 0.0
        %1276 = vmatmul.mubr.f32.gmra.mrb[0].mxu0 %v1129
        %v1277 = vpop.f32.mrb[0].mxu0
        %v1278 = vadd.f32 0.0, %v1277
        %v1279 = vpop.f32.mrb[0].mxu0
        %v1280 = vadd.f32 0.0, %v1279
        %1281 = vmatprep.mubr.f32.mxu0 0.0
        %1282 = vmatmul.mubr.f32.gmra.mrb[0].mxu0 %v1132
        %v1283 = vpop.f32.mrb[0].mxu0
        %v1284 = vadd.f32 0.0, %v1283
        %v1285 = vpop.f32.mrb[0].mxu0
        %v1286 = vadd.f32 0.0, %v1285
        %1287 = vdwg.mxu0
        %1288 = vmatprep.subr.mxu0 0.0
        %1289 = vmatpush1.msra.mxu0 %v350
        %1290 = vmatprep.subr.mxu0 0.0
        %1291 = vmatpush1.msra.mxu0 %v355
        %1292 = vmatprep.subr.mxu0 0.0
        %1293 = vmatpush1.msra.mxu0 %v360
        %1294 = vmatprep.subr.mxu0 0.0
        %1295 = vmatpush1.msra.mxu0 %v365
        %1296 = vmatprep.subr.mxu0 0.0
        %1297 = vmatpush1.msra.mxu0 %v370
        %1298 = vmatprep.subr.mxu0 0.0
        %1299 = vmatpush1.msra.mxu0 %v375
        %1300 = vmatprep.subr.mxu0 0.0
        %1301 = vmatpush1.msra.mxu0 %v380
        %1302 = vmatprep.subr.mxu0 0.0
        %1303 = vmatpush1.msra.mxu0 %v385
        %1304 = vmatprep.subr.mxu0 0.0
        %1305 = vmatpush1.msra.mxu0 0.0
        %1306 = vmatprep.subr.mxu0 0.0
        %1307 = vmatpush1.msra.mxu0 0.0
        %1308 = vmatprep.subr.mxu0 0.0
        %1309 = vmatpush1.msra.mxu0 0.0
        %1310 = vmatprep.subr.mxu0 0.0
        %1311 = vmatpush1.msra.mxu0 0.0
        %1312 = vmatprep.subr.mxu0 0.0
        %1313 = vmatpush1.msra.mxu0 0.0
        %1314 = vmatprep.subr.mxu0 0.0
        %1315 = vmatpush1.msra.mxu0 0.0
        %1316 = vmatprep.subr.mxu0 0.0
        %1317 = vmatpush1.msra.mxu0 0.0
        %1318 = vmatprep.subr.mxu0 0.0
        %1319 = vmatpush1.msra.mxu0 0.0
        %1320 = vmatprep.subr.mxu0 0.0
        %1321 = vmatpush1.msra.mxu0 0.0
        %1322 = vmatprep.subr.mxu0 0.0
        %1323 = vmatpush1.msra.mxu0 0.0
        %1324 = vmatprep.subr.mxu0 0.0
        %1325 = vmatpush1.msra.mxu0 0.0
        %1326 = vmatprep.subr.mxu0 0.0
        %1327 = vmatpush1.msra.mxu0 0.0
        %1328 = vmatprep.subr.mxu0 0.0
        %1329 = vmatpush1.msra.mxu0 0.0
        %1330 = vmatprep.subr.mxu0 0.0
        %1331 = vmatpush1.msra.mxu0 0.0
        %1332 = vmatprep.subr.mxu0 0.0
        %1333 = vmatpush1.msra.mxu0 0.0
        %1334 = vmatprep.subr.mxu0 0.0
        %1335 = vmatpush1.msra.mxu0 0.0
        %1336 = vmatprep.subr.mxu0 0.0
        %1337 = vmatpush1.msra.mxu0 0.0
        %1338 = vmatprep.subr.mxu0 0.0
        %1339 = vmatpush1.msra.mxu0 0.0
        %1340 = vmatprep.subr.mxu0 0.0
        %1341 = vmatpush1.msra.mxu0 0.0
        %1342 = vmatprep.subr.mxu0 0.0
        %1343 = vmatpush1.msra.mxu0 0.0
        %1344 = vmatprep.subr.mxu0 0.0
        %1345 = vmatpush1.msra.mxu0 0.0
        %1346 = vmatprep.subr.mxu0 0.0
        %1347 = vmatpush1.msra.mxu0 0.0
        %1348 = vmatprep.subr.mxu0 0.0
        %1349 = vmatpush1.msra.mxu0 0.0
        %1350 = vmatprep.subr.mxu0 0.0
        %1351 = vmatpush1.msra.mxu0 0.0
        %1352 = vmatprep.mubr.f32.mxu0 0.0
        %1353 = vmatmul.mubr.f32.gmra.mrb[0].mxu0 %v1129
        %v1354 = vpop.f32.mrb[0].mxu0
        %v1355 = vadd.f32 0.0, %v1354
        %v1356 = vpop.f32.mrb[0].mxu0
        %1357 = vmatprep.mubr.f32.mxu0 0.0
        %1358 = vmatmul.mubr.f32.gmra.mrb[0].mxu0 %v1132
        %v1359 = vpop.f32.mrb[0].mxu0
        %v1360 = vadd.f32 0.0, %v1359
        %v1361 = vpop.f32.mrb[0].mxu0
        %1362 = vdwg.mxu0
        %1363 = vst.msk [vmem:[#allocation2 + $0x48] sm:$0xff] %vm387, %v1201
        %1364 = vst.msk [vmem:[#allocation2 + $0x50] sm:$0xff] %vm387, %v1207
        %1367 = vrot.lane.b32.xlu0 %v1201, 64
        %v1368 = vpop.permute.xlu0 %1367
        %1369 = vrot.lane.b32.xlu0 %v1207, 64
        %v1370 = vpop.permute.xlu0 %1369
        %1373 = vst.msk [vmem:[#allocation2 + $0x58] sm:$0xff] %vm387, %v1368
        %1374 = vst.msk [vmem:[#allocation2 + $0x60] sm:$0xff] %vm387, %v1370
        %1375 = vst.msk [vmem:[#allocation2 + $0x68] sm:$0xff] %vm387, %v1203
        %1376 = vst.msk [vmem:[#allocation2 + $0x70] sm:$0xff] %vm387, %v1209
        %1379 = vrot.lane.b32.xlu0 %v1203, 64
        %v1380 = vpop.permute.xlu0 %1379
        %1381 = vrot.lane.b32.xlu0 %v1209, 64
        %v1382 = vpop.permute.xlu0 %1381
        %1385 = vst.msk [vmem:[#allocation2 + $0x78] sm:$0xff] %vm387, %v1380
        %1386 = vst.msk [vmem:[#allocation2 + $0x80] sm:$0xff] %vm387, %v1382
        %1387 = vst.msk [vmem:[#allocation2 + $0x88] sm:$0xff] %vm387, %v1278
        %1388 = vst.msk [vmem:[#allocation2 + $0x90] sm:$0xff] %vm387, %v1284
        %1391 = vrot.lane.b32.xlu0 %v1278, 64
        %v1392 = vpop.permute.xlu0 %1391
        %1393 = vrot.lane.b32.xlu0 %v1284, 64
        %v1394 = vpop.permute.xlu0 %1393
        %1397 = vst.msk [vmem:[#allocation2 + $0x98] sm:$0xff] %vm387, %v1392
        %1398 = vst.msk [vmem:[#allocation2 + $0xa0] sm:$0xff] %vm387, %v1394
        %1399 = vst.msk [vmem:[#allocation2 + $0xa8] sm:$0xff] %vm387, %v1280
        %1400 = vst.msk [vmem:[#allocation2 + $0xb0] sm:$0xff] %vm387, %v1286
        %1403 = vrot.lane.b32.xlu0 %v1280, 64
        %v1404 = vpop.permute.xlu0 %1403
        %1405 = vrot.lane.b32.xlu0 %v1286, 64
        %v1406 = vpop.permute.xlu0 %1405
        %1409 = vst.msk [vmem:[#allocation2 + $0xb8] sm:$0xff] %vm387, %v1404
        %1410 = vst.msk [vmem:[#allocation2 + $0xc0] sm:$0xff] %vm387, %v1406
        %1411 = vst.msk [vmem:[#allocation2 + $0xc8] sm:$0xff] %vm387, %v1355
        %1412 = vst.msk [vmem:[#allocation2 + $0xd0] sm:$0xff] %vm387, %v1360
        %v1413 = vld [vmem:[%s4] sm:$0xff]
        %v1414 = vld [vmem:[%s4 + $0x8] sm:$0xff]
        %v1415 = vld [vmem:[%s4 + $0x10] sm:$0xff]
        %v1416 = vld [vmem:[%s4 + $0x18] sm:$0xff]
        %v1417 = vld [vmem:[#allocation2 + $0x48] sm:$0xff]
        %v1418 = vld [vmem:[#allocation2 + $0x50] sm:$0xff]
        %v1419 = vld [vmem:[#allocation2 + $0x58] sm:$0xff]
        %v1420 = vld [vmem:[#allocation2 + $0x60] sm:$0xff]
        %v1421 = vld [vmem:[#allocation2 + $0x68] sm:$0xff]
        %v1422 = vld [vmem:[#allocation2 + $0x70] sm:$0xff]
        %v1423 = vld [vmem:[#allocation2 + $0x78] sm:$0xff]
        %v1424 = vld [vmem:[#allocation2 + $0x80] sm:$0xff]
        %v1425 = vld [vmem:[#allocation2 + $0x88] sm:$0xff]
        %v1426 = vld [vmem:[#allocation2 + $0x90] sm:$0xff]
        %v1427 = vld [vmem:[#allocation2 + $0x98] sm:$0xff]
        %v1428 = vld [vmem:[#allocation2 + $0xa0] sm:$0xff]
        %v1429 = vld [vmem:[#allocation2 + $0xa8] sm:$0xff]
        %v1430 = vld [vmem:[#allocation2 + $0xb0] sm:$0xff]
        %v1431 = vld [vmem:[#allocation2 + $0xb8] sm:$0xff]
        %v1432 = vld [vmem:[#allocation2 + $0xc0] sm:$0xff]
        %v1433 = vld [vmem:[#allocation2 + $0xc8] sm:$0xff]
        %v1434 = vld [vmem:[#allocation2 + $0xd0] sm:$0xff]
        %vm1435 = vcmask 130048
        %v1437 = vsel %vm1435, %v1414, 0
        %v1440 = vsel %vm1435, %v1416, 0
        %1442 = vmatprep.subr.mxu0 0.0
        %1443 = vmatpush1.msra.mxu0 %v1417
        %1444 = vmatprep.subr.mxu0 0.0
        %1445 = vmatpush1.msra.mxu0 %v1418
        %1446 = vmatprep.subr.mxu0 0.0
        %1447 = vmatpush1.msra.mxu0 %v1419
        %1448 = vmatprep.subr.mxu0 0.0
        %1449 = vmatpush1.msra.mxu0 %v1420
        %1450 = vmatprep.subr.mxu0 0.0
        %1451 = vmatpush1.msra.mxu0 %v1421
        %1452 = vmatprep.subr.mxu0 0.0
        %1453 = vmatpush1.msra.mxu0 %v1422
        %1454 = vmatprep.subr.mxu0 0.0
        %1455 = vmatpush1.msra.mxu0 %v1423
        %1456 = vmatprep.subr.mxu0 0.0
        %1457 = vmatpush1.msra.mxu0 %v1424
        %1458 = vmatprep.subr.mxu0 0.0
        %1459 = vmatpush1.msra.mxu0 %v1425
        %1460 = vmatprep.subr.mxu0 0.0
        %1461 = vmatpush1.msra.mxu0 %v1426
        %1462 = vmatprep.subr.mxu0 0.0
        %1463 = vmatpush1.msra.mxu0 %v1427
        %1464 = vmatprep.subr.mxu0 0.0
        %1465 = vmatpush1.msra.mxu0 %v1428
        %1466 = vmatprep.subr.mxu0 0.0
        %1467 = vmatpush1.msra.mxu0 %v1429
        %1468 = vmatprep.subr.mxu0 0.0
        %1469 = vmatpush1.msra.mxu0 %v1430
        %1470 = vmatprep.subr.mxu0 0.0
        %1471 = vmatpush1.msra.mxu0 %v1431
        %1472 = vmatprep.subr.mxu0 0.0
        %1473 = vmatpush1.msra.mxu0 %v1432
        %1474 = vmatprep.subr.mxu0 0.0
        %1475 = vmatpush1.msra.mxu0 %v1433
        %1476 = vmatprep.subr.mxu0 0.0
        %1477 = vmatpush1.msra.mxu0 %v1434
        %1478 = vmatprep.subr.mxu0 0.0
        %1479 = vmatpush1.msra.mxu0 0.0
        %1480 = vmatprep.subr.mxu0 0.0
        %1481 = vmatpush1.msra.mxu0 0.0
        %1482 = vmatprep.subr.mxu0 0.0
        %1483 = vmatpush1.msra.mxu0 0.0
        %1484 = vmatprep.subr.mxu0 0.0
        %1485 = vmatpush1.msra.mxu0 0.0
        %1486 = vmatprep.subr.mxu0 0.0
        %1487 = vmatpush1.msra.mxu0 0.0
        %1488 = vmatprep.subr.mxu0 0.0
        %1489 = vmatpush1.msra.mxu0 0.0
        %1490 = vmatprep.subr.mxu0 0.0
        %1491 = vmatpush1.msra.mxu0 0.0
        %1492 = vmatprep.subr.mxu0 0.0
        %1493 = vmatpush1.msra.mxu0 0.0
        %1494 = vmatprep.subr.mxu0 0.0
        %1495 = vmatpush1.msra.mxu0 0.0
        %1496 = vmatprep.subr.mxu0 0.0
        %1497 = vmatpush1.msra.mxu0 0.0
        %1498 = vmatprep.subr.mxu0 0.0
        %1499 = vmatpush1.msra.mxu0 0.0
        %1500 = vmatprep.subr.mxu0 0.0
        %1501 = vmatpush1.msra.mxu0 0.0
        %1502 = vmatprep.subr.mxu0 0.0
        %1503 = vmatpush1.msra.mxu0 0.0
        %1504 = vmatprep.subr.mxu0 0.0
        %1505 = vmatpush1.msra.mxu0 0.0
        %1506 = vmatprep.mubr.f32.mxu0 %v1437
        %1507 = vmatmul.mubr.f32.gmra.mrb[0].mxu0 %v1413
        %v1508 = vpop.f32.mrb[0].mxu0
        %v1509 = vadd.f32 0.0, %v1508
        %v1510 = vpop.f32.mrb[0].mxu0
        %1511 = vmatprep.mubr.f32.mxu0 %v1440
        %1512 = vmatmul.mubr.f32.gmra.mrb[0].mxu0 %v1415
        %v1513 = vpop.f32.mrb[0].mxu0
        %v1514 = vadd.f32 0.0, %v1513
        %v1515 = vpop.f32.mrb[0].mxu0
        %1516 = vdwg.mxu0
        %v1517 = vadd.f32 %v1060, %v1509
        %v1518 = vadd.f32 %v1065, %v1514
        %v1519 = vld [vmem:[%s6] sm:$0xff]
        %v1520 = vld [vmem:[%s6 + $0x8] sm:$0xff]
        %1522 = vset.pattern.permute.xlu0 0
        %1523 = vperm.xlu0 %1522, %v1519
        %v1524 = vpop.permute.xlu0 %1523
        %1527 = vset.pattern.permute.xlu0 0
        %1528 = vperm.xlu0 %1527, %v1520
        %v1529 = vpop.permute.xlu0 %1528
        %v1531 = vadd.f32 %v1517, %v1524
        %v1532 = vadd.f32 %v1518, %v1529
        %v1533 = vtanh.pop %v1531
        %v1534 = vtanh.pop %v1532
        %v1535 = vld [vmem:[%s343] sm:$0xff]
        %v1536 = vld [vmem:[%s343 + $0x8] sm:$0xff]
        %v1537 = vsub.f32 %v1533, %v1535
        %v1538 = vsub.f32 %v1534, %v1536
        %v1539 = vmul.f32 %v1091, %v1537
        %v1540 = vmul.f32 %v1093, %v1538
        %v1541 = vadd.f32 %v1535, %v1539
        %v1542 = vadd.f32 %v1536, %v1540
        %1543 = vst.msk [vmem:[%s338] sm:$0xff] %vm387, %v1541
        %1544 = vst.msk [vmem:[%s338 + $0x8] sm:$0xff] %vm387, %v1542
        %s1545 = sand.u32 %s190, 1
        %s1546 = scalar_lea.sflag [#allocation6], %s1545
        %s1547 = sand.u32 %s190, 1
        %s1548 = smul.addr %s1547, 16
        %s1549 = scalar_lea.vmem [#allocation10], %s1548
        // Predicated region
        $region61: #{tpu_custom_call.1} parent=47 // pred_check
          %p1550 = pneg %p200
        $region62: #{tpu_custom_call.1} parent=47 // pred_check_branch
          %1552 = sbr.rel (%p1550) target = $region64
        $region63: #{tpu_custom_call.1} parent=47 // pred_region
          %s1553 = smul.u32 2, %s25
          %s1555 = ssub.s32 256, 256
          %1556 = vsyncadd %s1546, %s1555
          %s1557 = smul.addr %s1553, 128
          %s1558 = scalar_lea.hbm %s7, %s1557
          %s1559 = sshll.u32 %s1549, 4
          %s1560 = int_to_ptr.vmem [resolvable:$true] %s1559
          %1565 = dma.vmem_to_hbm [thread:$0]  %s1560, 256, %s1558, %s1546, 128, 128, 8
        $region64: #{tpu_custom_call.1} parent=47 // pred_fallthru
          _
      $region48: #{tpu_custom_call.1} parent=5 // pred_fallthru
        _
      %p1566 = scmp.le.s32.totalorder 2, %s20
      // Predicated region
      $region65: #{tpu_custom_call.1} parent=5 // pred_check
        %p1567 = pneg %p1566
      $region66: #{tpu_custom_call.1} parent=5 // pred_check_branch
        %1569 = sbr.rel (%p1567) target = $region68
      $region67: #{tpu_custom_call.1} parent=5 // pred_region
        %s1570 = ssub.s32 %s20, 2
        // Predicated region
        $region69: #{tpu_custom_call.1} parent=67 // pred_check
          %p1571 = pneg %p206
        $region70: #{tpu_custom_call.1} parent=67 // pred_check_branch
          %1573 = sbr.rel (%p1571) target = $region72
        $region71: #{tpu_custom_call.1} parent=67 // pred_region
          %s1574 = sand.u32 %s191, 1
          %s1575 = scalar_lea.sflag [#allocation6], %s1574
          %s1576 = sand.u32 %s191, 1
          %s1577 = smul.addr %s1576, 16
          %s1578 = scalar_lea.vmem [#allocation10], %s1577
          %1579 = dma.done %s1575, 256
        $region72: #{tpu_custom_call.1} parent=67 // pred_fallthru
          _
      $region68: #{tpu_custom_call.1} parent=5 // pred_fallthru
        _
    $region6: #{tpu_custom_call.1} parent=1 // loop_footer
      %s24 = sadd.s32 1, %s20
    $region7: #{tpu_custom_call.1} parent=1 // loop_footer_branch
      %19 = sbr.rel target = $region3
    $region8: #{tpu_custom_call.1} parent=1 // loop_exit
      _
    %1580 = vsyncpa [#allocation5], 1
    %s1581 = scalar_lea.sflag [#allocation5], 1
    %1582 = vsyncpa %s1581, 1
    %1583 = vsyncpa [#allocation8], 1
    %1584 = vsyncpa [#allocation6], 1
    %s1585 = scalar_lea.sflag [#allocation6], 1
    %1586 = vsyncpa %s1585, 1

</llo_original>
